<compile_context>
chip_gen: v5e
topology: v5e:2x2
jax: 0.10.0
libtpu: 0.0.40
codegen_flags: <defaults>
</compile_context>

<pallas_src>
import functools
import math

import jax
import jax.numpy as jnp
from jax.experimental import pallas as pl
from jax.experimental.pallas import tpu as pltpu


def _window_attn_kernel(x_ref, wqkv_ref, wproj_ref, bproj_ref, o_ref,
                        qkv_ref, acc_ref, *,
                        windows_per_block, tokens, num_heads, head_dim):
    # x_ref    : (Bt*N, C)    compute dtype
    # wqkv_ref : (C, 3C)      compute dtype (q columns pre-scaled by 1/sqrt(Dh))
    # wproj_ref: (C, C)       compute dtype
    # bproj_ref: (1, C)       float32
    # o_ref    : (Bt*N, C)    output dtype
    # qkv_ref  : (Bt*N, 3C)   compute-dtype VMEM scratch (fused QKV result)
    # acc_ref  : (Bt*N, C)    float32 VMEM scratch (output-projection accumulator)
    Bt, N, H, Dh = windows_per_block, tokens, num_heads, head_dim
    C = H * Dh
    rows = Bt * N
    cdt = qkv_ref.dtype

    # Fused QKV projection for all Bt windows at once: one big MXU GEMM with
    # f32 accumulation.  The single f32 -> compute-dtype cast happens at this
    # store, so the f32 copy is never held past it (matters most on v5e).
    qkv_ref[...] = jnp.dot(
        x_ref[...], wqkv_ref[...],
        preferred_element_type=jnp.float32).astype(cdt)

    # Seed the output accumulator with the proj bias (one hoisted broadcast).
    acc_ref[...] = jnp.broadcast_to(
        bproj_ref[...].astype(jnp.float32), (rows, C))

    # Per-head attention + that head's slice of the output projection.
    # Every per-head operand is read through a ref slice at a static offset
    # (zero-cost view -> vld slots, which have slack); the only value carried
    # across iterations is acc_ref, so a single head's f32 scores /
    # probabilities are live at any time.
    for h in range(H):
        q = qkv_ref[:, h * Dh:(h + 1) * Dh].reshape(Bt, N, Dh)
        k = qkv_ref[:, C + h * Dh:C + (h + 1) * Dh].reshape(Bt, N, Dh)
        v = qkv_ref[:, 2 * C + h * Dh:2 * C + (h + 1) * Dh].reshape(Bt, N, Dh)

        # 1/sqrt(Dh) is folded into the q columns of wqkv in the wrapper.
        s = jnp.einsum('bnd,bmd->bnm', q, k,
                       preferred_element_type=jnp.float32)      # (Bt, N, N) f32
        s = s - jnp.max(s, axis=-1, keepdims=True)
        p = jnp.exp(s)                                          # unnormalized
        denom = jnp.sum(p, axis=-1, keepdims=True)              # (Bt, N, 1)

        ctx = jnp.einsum('bnm,bmd->bnd', p.astype(cdt), v,
                         preferred_element_type=jnp.float32)    # (Bt, N, Dh) f32
        # Normalize the (N, Dh) context instead of the (N, N) probabilities:
        # ~N/Dh fewer VPU multiplies; the reciprocal runs on the EUP.
        ctx = ctx * pl.reciprocal(denom, approx=True)

        # This head's slice of the output projection, accumulated in f32.
        # TODO(synk): for large C (>= 2 lane tiles) a fused (Bt*N,C)x(C,C)
        # proj GEMM with >=128-lane grouped ctx writes would use the MXU K-dim
        # better than this per-head K=Dh contraction.
        acc_ref[...] += jnp.dot(
            ctx.reshape(rows, Dh).astype(cdt),
            wproj_ref[h * Dh:(h + 1) * Dh, :],
            preferred_element_type=jnp.float32)

    # TODO(synk): for C < 128 lanes this store is lane-masked; a wrapper-side
    # (n_blocks, Bt*N*C) output layout would make it dense but would need an
    # in-kernel cross-lane relayout of the GEMM result, so it is omitted.
    o_ref[...] = acc_ref[...].astype(o_ref.dtype)


def _vmem_capacity_bytes():
    """Physical VMEM per TensorCore; conservative 64 MiB (v7x) fallback."""
    try:
        return int(pltpu.get_tpu_info().vmem_capacity_bytes)
    except Exception:
        return 64 * 1024 * 1024


def _resident_spec(block_shape, nbytes):
    """BlockSpec for a grid-invariant operand (weights / bias).

    Constant index_map keeps the block resident across grid steps.  Large
    blocks are single-buffered (default double-buffering would waste VMEM on
    data that never changes); tiny blocks keep the default, most-tested path.
    """
    index_map = lambda b: (0,) * len(block_shape)
    if nbytes >= (512 * 1024):
        try:
            return pl.BlockSpec(block_shape, index_map,
                                pipeline_mode=pl.Buffered(1))
        except (AttributeError, TypeError):
            pass  # older JAX without BlockSpec.pipeline_mode / pl.Buffered
    return pl.BlockSpec(block_shape, index_map)


def _choose_windows_per_block(B_, N, C, num_heads, itemsize, out_itemsize):
    """Pick Bt (windows per grid step) from a generation-aware VMEM budget."""
    cap = _vmem_capacity_bytes()
    # ~70% of physical VMEM (=> ~45 MiB on v7x's 64 MiB/TC, ~90 MiB on
    # v5e/v6e's 128 MiB), minus the resident weight blocks (counted at 2
    # buffers to stay conservative when they are not single-buffered).
    weight_bytes = 2 * (3 * C * C + C * C) * itemsize + C * 4
    budget = max(int(cap * 0.70) - weight_bytes, 2 * 1024 * 1024)

    Dh = C // num_heads
    # Sublane alignment for the row slab: 8 rows (f32), 16 (bf16), 32 (int8).
    sub = 8 * max(1, 4 // itemsize)

    def block_bytes(d):
        rows = d * N
        return (2 * rows * C * itemsize          # x block (double-buffered)
                + 2 * rows * C * out_itemsize    # out block (double-buffered)
                + rows * 3 * C * itemsize        # qkv scratch
                + rows * C * 4                   # f32 proj accumulator
                + 2 * d * N * N * 4              # one head's f32 scores + exp
                + 3 * rows * Dh * itemsize       # one head's q/k/v views
                + rows * Dh * 4)                 # one head's f32 context

    cands = [d for d in range(1, B_ + 1)
             if B_ % d == 0 and ((d * N) % sub == 0 or d == B_)]
    fitting = [d for d in cands if block_bytes(d) <= budget] or [min(cands)]

    def score(d):
        nb = B_ // d
        rows = d * N
        return (nb >= 2 or B_ == 1,       # keep >=2 grid steps (v7x: 2 TCs)
                rows % 256 == 0,          # v6e/v7x MXU is 2x256^2
                nb % 2 == 0 or nb == 1,   # even split across the 2 TCs (v7x)
                rows % 128 == 0,          # v5e MXU M alignment
                d)                        # then the largest tile that fits
    return max(fitting, key=score)


def window_attention_3d(x, w_qkv, w_proj, b_proj, *, num_heads,
                        windows_per_block=None, compute_dtype=None):
    """x: (B_, N, C); w_qkv: (3C, C) torch layout; w_proj: (C, C) torch layout."""
    B_, N, C = x.shape
    assert C % num_heads == 0
    head_dim = C // num_heads
    compute_dtype = jnp.dtype(compute_dtype or x.dtype)
    itemsize = compute_dtype.itemsize
    out_itemsize = jnp.dtype(x.dtype).itemsize

    if windows_per_block is None:
        windows_per_block = _choose_windows_per_block(
            B_, N, C, num_heads, itemsize, out_itemsize)
    Bt = windows_per_block
    assert B_ % Bt == 0, "windows_per_block must divide B_"
    n_blocks = B_ // Bt
    rows_per_block = Bt * N

    # Torch Linear weights are (out_features, in_features): transpose so the
    # kernel computes y = x @ W.  Fold the 1/sqrt(head_dim) attention scale
    # into the q output rows (exact since qkv_bias=False), once, at trace time.
    # Note: q/k/v are computed in compute_dtype (e.g. bf16) before QK^T when
    # compute_dtype != float32 -- standard inference downcast.
    scale = 1.0 / math.sqrt(head_dim)
    w_qkv_scaled = w_qkv.at[:C, :].multiply(scale)
    w_qkv_t = jnp.transpose(w_qkv_scaled).astype(compute_dtype)    # (C, 3C)
    w_proj_t = jnp.transpose(w_proj).astype(compute_dtype)         # (C, C)
    b_proj_2d = b_proj.reshape(1, C).astype(jnp.float32)

    x2d = x.reshape(B_ * N, C).astype(compute_dtype)

    kernel = functools.partial(
        _window_attn_kernel,
        windows_per_block=Bt, tokens=N, num_heads=num_heads, head_dim=head_dim)

    # Scheduling hint for XLA around the custom call.
    M = B_ * N
    flops = 2 * M * C * 3 * C + 4 * B_ * N * N * C + 2 * M * C * C
    transcendentals = B_ * num_heads * N * N                       # exp()
    bytes_accessed = (M * C * itemsize                              # x in
                      + (3 * C * C + C * C) * itemsize + C * 4     # weights
                      + M * C * out_itemsize)                      # out
    cost = pl.CostEstimate(flops=flops, transcendentals=transcendentals,
                           bytes_accessed=bytes_accessed)

    cap = _vmem_capacity_bytes()
    vmem_limit = min(int(cap * 0.8), 100 * 1024 * 1024)

    out2d = pl.pallas_call(
        kernel,
        out_shape=jax.ShapeDtypeStruct((B_ * N, C), x.dtype),
        grid_spec=pltpu.PrefetchScalarGridSpec(
            num_scalar_prefetch=0,
            grid=(n_blocks,),
            in_specs=[
                pl.BlockSpec((rows_per_block, C), lambda b: (b, 0)),
                _resident_spec((C, 3 * C), 3 * C * C * itemsize),
                _resident_spec((C, C), C * C * itemsize),
                _resident_spec((1, C), C * 4),
            ],
            out_specs=pl.BlockSpec((rows_per_block, C), lambda b: (b, 0)),
            scratch_shapes=[
                pltpu.VMEM((rows_per_block, 3 * C), compute_dtype),  # qkv
                pltpu.VMEM((rows_per_block, C), jnp.float32),        # proj acc
            ],
        ),
        compiler_params=pltpu.CompilerParams(
            dimension_semantics=("parallel",),
            vmem_limit_bytes=vmem_limit,
        ),
        cost_estimate=cost,
    )(x2d, w_qkv_t, w_proj_t, b_proj_2d)

    return out2d.reshape(B_, N, C)


def _reference(x, w_qkv, w_proj, b_proj, num_heads):
    B_, N, C = x.shape
    Dh = C // num_heads
    qkv = x @ w_qkv.T                                    # qkv_bias=False
    qkv = qkv.reshape(B_, N, 3, num_heads, Dh).transpose(2, 0, 3, 1, 4)
    q, k, v = qkv[0], qkv[1], qkv[2]
    scale = 1.0 / math.sqrt(Dh)
    scores = jnp.einsum('bhnc,bhmc->bhnm', q, k) * scale
    attn = jax.nn.softmax(scores, axis=-1)
    out = jnp.einsum('bhnm,bhmc->bhnc', attn, v)
    out = out.transpose(0, 2, 1, 3).reshape(B_, N, C)
    return out @ w_proj.T + b_proj


if __name__ == "__main__":
    # Small shapes consistent with the module:
    # window_size = (2, 2, 4) -> N = 16 tokens per window; 8 windows*batch.
    B_, N, C, num_heads = 8, 16, 32, 4

    key = jax.random.PRNGKey(0)
    k_x, k_wqkv, k_wproj, k_bproj = jax.random.split(key, 4)

    x = jax.random.normal(k_x, (B_, N, C), dtype=jnp.float32)
    # Deterministic parameters (torch Linear layout: (out_features, in_features)).
    w_qkv = jax.random.normal(k_wqkv, (3 * C, C), dtype=jnp.float32) * 0.05
    w_proj = jax.random.normal(k_wproj, (C, C), dtype=jnp.float32) * 0.05
    b_proj = jax.random.normal(k_bproj, (C,), dtype=jnp.float32) * 0.05

    out = window_attention_3d(x, w_qkv, w_proj, b_proj, num_heads=num_heads)
    out = jax.block_until_ready(out)

    ref = _reference(x, w_qkv, w_proj, b_proj, num_heads)
    assert out.shape == ref.shape
    err = float(jnp.max(jnp.abs(out - ref)))
    # Tolerance accounts for the EUP approximate reciprocal in the softmax.
    assert err < 5e-3, f"mismatch vs reference: max abs err {err}"

    print("KERNEL_OK")
</pallas_src>

<mosaic_0001>
module attributes {stable_mosaic.version = 11 : i64} {
  func.func @_window_attn_kernel(%arg0: i32, %arg1: memref<64x32xf32, #tpu.memory_space<vmem>>, %arg2: memref<32x96xf32, #tpu.memory_space<vmem>>, %arg3: memref<32x32xf32, #tpu.memory_space<vmem>>, %arg4: memref<1x32xf32, #tpu.memory_space<vmem>>, %arg5: memref<64x32xf32, #tpu.memory_space<vmem>>, %arg6: memref<64x96xf32, #tpu.memory_space<vmem>>, %arg7: memref<64x32xf32, #tpu.memory_space<vmem>>) attributes {dimension_semantics = [#tpu.dimension_semantics<parallel>], iteration_bounds = array<i64: 2>, scalar_prefetch = 0 : i64, scratch_operands = 2 : i64, tpu.core_type = #tpu.core_type<tc>, window_params = [{transform_indices = @transform_0, window_bounds = array<i64: 64, 32>}, {pipeline_mode = #tpu.pipeline_mode<synchronous>, transform_indices = @transform_1, window_bounds = array<i64: 32, 96>}, {pipeline_mode = #tpu.pipeline_mode<synchronous>, transform_indices = @transform_2, window_bounds = array<i64: 32, 32>}, {pipeline_mode = #tpu.pipeline_mode<synchronous>, transform_indices = @transform_3, window_bounds = array<i64: 1, 32>}, {transform_indices = @transform_4, window_bounds = array<i64: 64, 32>}]} {
    %c0 = arith.constant 0 : index
    %c0_0 = arith.constant 0 : index
    %0 = vector.load %arg1[%c0, %c0_0] : memref<64x32xf32, #tpu.memory_space<vmem>>, vector<64x32xf32>
    %c0_1 = arith.constant 0 : index
    %c0_2 = arith.constant 0 : index
    %1 = vector.load %arg2[%c0_1, %c0_2] : memref<32x96xf32, #tpu.memory_space<vmem>>, vector<32x96xf32>
    %cst = arith.constant dense<0.000000e+00> : vector<64x96xf32>
    %2 = tpu.matmul %0, %1, %cst {dimension_numbers = #tpu.dot_dimension_numbers<[1], [0], [0], [1], [0, 0, 1, 1], [], []>} : vector<64x32xf32>, vector<32x96xf32>, vector<64x96xf32> -> vector<64x96xf32>
    %c0_3 = arith.constant 0 : index
    %c0_4 = arith.constant 0 : index
    %3 = vector.load %arg6[%c0_3, %c0_4] : memref<64x96xf32, #tpu.memory_space<vmem>>, vector<64x96xf32>
    tpu.vector_store %arg6[%c0_3, %c0_4], %2 {strides = array<i32>} : memref<64x96xf32, #tpu.memory_space<vmem>>, vector<64x96xf32>,
    %c0_5 = arith.constant 0 : index
    %c0_6 = arith.constant 0 : index
    %4 = vector.load %arg4[%c0_5, %c0_6] : memref<1x32xf32, #tpu.memory_space<vmem>>, vector<1x32xf32>
    %5 = vector.shape_cast %4 : vector<1x32xf32> to vector<1x32xf32>
    %6 = vector.broadcast %5 : vector<1x32xf32> to vector<64x32xf32>
    %c0_7 = arith.constant 0 : index
    %c0_8 = arith.constant 0 : index
    %7 = vector.load %arg7[%c0_7, %c0_8] : memref<64x32xf32, #tpu.memory_space<vmem>>, vector<64x32xf32>
    tpu.vector_store %arg7[%c0_7, %c0_8], %6 {strides = array<i32>} : memref<64x32xf32, #tpu.memory_space<vmem>>, vector<64x32xf32>,
    %c0_9 = arith.constant 0 : index
    %c0_10 = arith.constant 0 : index
    %8 = vector.load %arg6[%c0_9, %c0_10] : memref<64x96xf32, #tpu.memory_space<vmem>>, vector<64x8xf32>
    %9 = vector.shape_cast %8 : vector<64x8xf32> to vector<4x16x8xf32>
    %c0_11 = arith.constant 0 : index
    %c32 = arith.constant 32 : index
    %10 = vector.load %arg6[%c0_11, %c32] : memref<64x96xf32, #tpu.memory_space<vmem>>, vector<64x8xf32>
    %11 = vector.shape_cast %10 : vector<64x8xf32> to vector<4x16x8xf32>
    %c0_12 = arith.constant 0 : index
    %c64 = arith.constant 64 : index
    %12 = vector.load %arg6[%c0_12, %c64] : memref<64x96xf32, #tpu.memory_space<vmem>>, vector<64x8xf32>
    %13 = vector.shape_cast %12 : vector<64x8xf32> to vector<4x16x8xf32>
    "tpu.trace_start"() <{level = 10 : i32, message = "bnd,bmd->bnm"}> : () -> ()
    %cst_13 = arith.constant dense<0.000000e+00> : vector<4x16x16xf32>
    %14 = tpu.matmul %9, %11, %cst_13 {dimension_numbers = #tpu.dot_dimension_numbers<[2], [2], [1], [1], [0, 0, 0, 1, 1, 1], [0], [0]>} : vector<4x16x8xf32>, vector<4x16x8xf32>, vector<4x16x16xf32> -> vector<4x16x16xf32>
    "tpu.trace_stop"() : () -> ()
    %cst_14 = arith.constant dense<0xFF800000> : vector<4x16xf32>
    %15 = vector.multi_reduction <maximumf>, %14, %cst_14 [2] : vector<4x16x16xf32> to vector<4x16xf32>
    %16 = vector.shape_cast %15 : vector<4x16xf32> to vector<4x16x1xf32>
    %17 = vector.broadcast %16 : vector<4x16x1xf32> to vector<4x16x16xf32>
    %18 = arith.subf %14, %17 : vector<4x16x16xf32>
    %19 = math.exp %18 : vector<4x16x16xf32>
    %cst_15 = arith.constant dense<0.000000e+00> : vector<4x16xf32>
    %20 = vector.multi_reduction <add>, %19, %cst_15 [2] : vector<4x16x16xf32> to vector<4x16xf32>
    %21 = vector.shape_cast %20 : vector<4x16xf32> to vector<4x16x1xf32>
    "tpu.trace_start"() <{level = 10 : i32, message = "bnm,bmd->bnd"}> : () -> ()
    %cst_16 = arith.constant dense<0.000000e+00> : vector<4x16x8xf32>
    %22 = tpu.matmul %19, %13, %cst_16 {dimension_numbers = #tpu.dot_dimension_numbers<[2], [1], [1], [2], [0, 0, 0, 1, 1, 2], [0], [0]>} : vector<4x16x16xf32>, vector<4x16x8xf32>, vector<4x16x8xf32> -> vector<4x16x8xf32>
    "tpu.trace_stop"() : () -> ()
    %23 = tpu.reciprocal %21 {approx = true} : vector<4x16x1xf32> -> vector<4x16x1xf32>
    %24 = vector.broadcast %23 : vector<4x16x1xf32> to vector<4x16x8xf32>
    %25 = arith.mulf %22, %24 : vector<4x16x8xf32>
    %c0_17 = arith.constant 0 : index
    %c0_18 = arith.constant 0 : index
    %26 = vector.load %arg7[%c0_17, %c0_18] : memref<64x32xf32, #tpu.memory_space<vmem>>, vector<64x32xf32>
    %27 = vector.shape_cast %25 : vector<4x16x8xf32> to vector<64x8xf32>
    %c0_19 = arith.constant 0 : index
    %c0_20 = arith.constant 0 : index
    %28 = vector.load %arg3[%c0_19, %c0_20] : memref<32x32xf32, #tpu.memory_space<vmem>>, vector<8x32xf32>
    %cst_21 = arith.constant dense<0.000000e+00> : vector<64x32xf32>
    %29 = tpu.matmul %27, %28, %cst_21 {dimension_numbers = #tpu.dot_dimension_numbers<[1], [0], [0], [1], [0, 0, 1, 1], [], []>} : vector<64x8xf32>, vector<8x32xf32>, vector<64x32xf32> -> vector<64x32xf32>
    %30 = arith.addf %26, %29 : vector<64x32xf32>
    %c0_22 = arith.constant 0 : index
    %c0_23 = arith.constant 0 : index
    %31 = vector.load %arg7[%c0_22, %c0_23] : memref<64x32xf32, #tpu.memory_space<vmem>>, vector<64x32xf32>
    tpu.vector_store %arg7[%c0_22, %c0_23], %30 {strides = array<i32>} : memref<64x32xf32, #tpu.memory_space<vmem>>, vector<64x32xf32>,
    %c0_24 = arith.constant 0 : index
    %c8 = arith.constant 8 : index
    %32 = vector.load %arg6[%c0_24, %c8] : memref<64x96xf32, #tpu.memory_space<vmem>>, vector<64x8xf32>
    %33 = vector.shape_cast %32 : vector<64x8xf32> to vector<4x16x8xf32>
    %c0_25 = arith.constant 0 : index
    %c40 = arith.constant 40 : index
    %34 = vector.load %arg6[%c0_25, %c40] : memref<64x96xf32, #tpu.memory_space<vmem>>, vector<64x8xf32>
    %35 = vector.shape_cast %34 : vector<64x8xf32> to vector<4x16x8xf32>
    %c0_26 = arith.constant 0 : index
    %c72 = arith.constant 72 : index
    %36 = vector.load %arg6[%c0_26, %c72] : memref<64x96xf32, #tpu.memory_space<vmem>>, vector<64x8xf32>
    %37 = vector.shape_cast %36 : vector<64x8xf32> to vector<4x16x8xf32>
    "tpu.trace_start"() <{level = 10 : i32, message = "bnd,bmd->bnm"}> : () -> ()
    %cst_27 = arith.constant dense<0.000000e+00> : vector<4x16x16xf32>
    %38 = tpu.matmul %33, %35, %cst_27 {dimension_numbers = #tpu.dot_dimension_numbers<[2], [2], [1], [1], [0, 0, 0, 1, 1, 1], [0], [0]>} : vector<4x16x8xf32>, vector<4x16x8xf32>, vector<4x16x16xf32> -> vector<4x16x16xf32>
    "tpu.trace_stop"() : () -> ()
    %cst_28 = arith.constant dense<0xFF800000> : vector<4x16xf32>
    %39 = vector.multi_reduction <maximumf>, %38, %cst_28 [2] : vector<4x16x16xf32> to vector<4x16xf32>
    %40 = vector.shape_cast %39 : vector<4x16xf32> to vector<4x16x1xf32>
    %41 = vector.broadcast %40 : vector<4x16x1xf32> to vector<4x16x16xf32>
    %42 = arith.subf %38, %41 : vector<4x16x16xf32>
    %43 = math.exp %42 : vector<4x16x16xf32>
    %cst_29 = arith.constant dense<0.000000e+00> : vector<4x16xf32>
    %44 = vector.multi_reduction <add>, %43, %cst_29 [2] : vector<4x16x16xf32> to vector<4x16xf32>
    %45 = vector.shape_cast %44 : vector<4x16xf32> to vector<4x16x1xf32>
    "tpu.trace_start"() <{level = 10 : i32, message = "bnm,bmd->bnd"}> : () -> ()
    %cst_30 = arith.constant dense<0.000000e+00> : vector<4x16x8xf32>
    %46 = tpu.matmul %43, %37, %cst_30 {dimension_numbers = #tpu.dot_dimension_numbers<[2], [1], [1], [2], [0, 0, 0, 1, 1, 2], [0], [0]>} : vector<4x16x16xf32>, vector<4x16x8xf32>, vector<4x16x8xf32> -> vector<4x16x8xf32>
    "tpu.trace_stop"() : () -> ()
    %47 = tpu.reciprocal %45 {approx = true} : vector<4x16x1xf32> -> vector<4x16x1xf32>
    %48 = vector.broadcast %47 : vector<4x16x1xf32> to vector<4x16x8xf32>
    %49 = arith.mulf %46, %48 : vector<4x16x8xf32>
    %c0_31 = arith.constant 0 : index
    %c0_32 = arith.constant 0 : index
    %50 = vector.load %arg7[%c0_31, %c0_32] : memref<64x32xf32, #tpu.memory_space<vmem>>, vector<64x32xf32>
    %51 = vector.shape_cast %49 : vector<4x16x8xf32> to vector<64x8xf32>
    %c8_33 = arith.constant 8 : index
    %c0_34 = arith.constant 0 : index
    %52 = vector.load %arg3[%c8_33, %c0_34] : memref<32x32xf32, #tpu.memory_space<vmem>>, vector<8x32xf32>
    %cst_35 = arith.constant dense<0.000000e+00> : vector<64x32xf32>
    %53 = tpu.matmul %51, %52, %cst_35 {dimension_numbers = #tpu.dot_dimension_numbers<[1], [0], [0], [1], [0, 0, 1, 1], [], []>} : vector<64x8xf32>, vector<8x32xf32>, vector<64x32xf32> -> vector<64x32xf32>
    %54 = arith.addf %50, %53 : vector<64x32xf32>
    %c0_36 = arith.constant 0 : index
    %c0_37 = arith.constant 0 : index
    %55 = vector.load %arg7[%c0_36, %c0_37] : memref<64x32xf32, #tpu.memory_space<vmem>>, vector<64x32xf32>
    tpu.vector_store %arg7[%c0_36, %c0_37], %54 {strides = array<i32>} : memref<64x32xf32, #tpu.memory_space<vmem>>, vector<64x32xf32>,
    %c0_38 = arith.constant 0 : index
    %c16 = arith.constant 16 : index
    %56 = vector.load %arg6[%c0_38, %c16] : memref<64x96xf32, #tpu.memory_space<vmem>>, vector<64x8xf32>
    %57 = vector.shape_cast %56 : vector<64x8xf32> to vector<4x16x8xf32>
    %c0_39 = arith.constant 0 : index
    %c48 = arith.constant 48 : index
    %58 = vector.load %arg6[%c0_39, %c48] : memref<64x96xf32, #tpu.memory_space<vmem>>, vector<64x8xf32>
    %59 = vector.shape_cast %58 : vector<64x8xf32> to vector<4x16x8xf32>
    %c0_40 = arith.constant 0 : index
    %c80 = arith.constant 80 : index
    %60 = vector.load %arg6[%c0_40, %c80] : memref<64x96xf32, #tpu.memory_space<vmem>>, vector<64x8xf32>
    %61 = vector.shape_cast %60 : vector<64x8xf32> to vector<4x16x8xf32>
    "tpu.trace_start"() <{level = 10 : i32, message = "bnd,bmd->bnm"}> : () -> ()
    %cst_41 = arith.constant dense<0.000000e+00> : vector<4x16x16xf32>
    %62 = tpu.matmul %57, %59, %cst_41 {dimension_numbers = #tpu.dot_dimension_numbers<[2], [2], [1], [1], [0, 0, 0, 1, 1, 1], [0], [0]>} : vector<4x16x8xf32>, vector<4x16x8xf32>, vector<4x16x16xf32> -> vector<4x16x16xf32>
    "tpu.trace_stop"() : () -> ()
    %cst_42 = arith.constant dense<0xFF800000> : vector<4x16xf32>
    %63 = vector.multi_reduction <maximumf>, %62, %cst_42 [2] : vector<4x16x16xf32> to vector<4x16xf32>
    %64 = vector.shape_cast %63 : vector<4x16xf32> to vector<4x16x1xf32>
    %65 = vector.broadcast %64 : vector<4x16x1xf32> to vector<4x16x16xf32>
    %66 = arith.subf %62, %65 : vector<4x16x16xf32>
    %67 = math.exp %66 : vector<4x16x16xf32>
    %cst_43 = arith.constant dense<0.000000e+00> : vector<4x16xf32>
    %68 = vector.multi_reduction <add>, %67, %cst_43 [2] : vector<4x16x16xf32> to vector<4x16xf32>
    %69 = vector.shape_cast %68 : vector<4x16xf32> to vector<4x16x1xf32>
    "tpu.trace_start"() <{level = 10 : i32, message = "bnm,bmd->bnd"}> : () -> ()
    %cst_44 = arith.constant dense<0.000000e+00> : vector<4x16x8xf32>
    %70 = tpu.matmul %67, %61, %cst_44 {dimension_numbers = #tpu.dot_dimension_numbers<[2], [1], [1], [2], [0, 0, 0, 1, 1, 2], [0], [0]>} : vector<4x16x16xf32>, vector<4x16x8xf32>, vector<4x16x8xf32> -> vector<4x16x8xf32>
    "tpu.trace_stop"() : () -> ()
    %71 = tpu.reciprocal %69 {approx = true} : vector<4x16x1xf32> -> vector<4x16x1xf32>
    %72 = vector.broadcast %71 : vector<4x16x1xf32> to vector<4x16x8xf32>
    %73 = arith.mulf %70, %72 : vector<4x16x8xf32>
    %c0_45 = arith.constant 0 : index
    %c0_46 = arith.constant 0 : index
    %74 = vector.load %arg7[%c0_45, %c0_46] : memref<64x32xf32, #tpu.memory_space<vmem>>, vector<64x32xf32>
    %75 = vector.shape_cast %73 : vector<4x16x8xf32> to vector<64x8xf32>
    %c16_47 = arith.constant 16 : index
    %c0_48 = arith.constant 0 : index
    %76 = vector.load %arg3[%c16_47, %c0_48] : memref<32x32xf32, #tpu.memory_space<vmem>>, vector<8x32xf32>
    %cst_49 = arith.constant dense<0.000000e+00> : vector<64x32xf32>
    %77 = tpu.matmul %75, %76, %cst_49 {dimension_numbers = #tpu.dot_dimension_numbers<[1], [0], [0], [1], [0, 0, 1, 1], [], []>} : vector<64x8xf32>, vector<8x32xf32>, vector<64x32xf32> -> vector<64x32xf32>
    %78 = arith.addf %74, %77 : vector<64x32xf32>
    %c0_50 = arith.constant 0 : index
    %c0_51 = arith.constant 0 : index
    %79 = vector.load %arg7[%c0_50, %c0_51] : memref<64x32xf32, #tpu.memory_space<vmem>>, vector<64x32xf32>
    tpu.vector_store %arg7[%c0_50, %c0_51], %78 {strides = array<i32>} : memref<64x32xf32, #tpu.memory_space<vmem>>, vector<64x32xf32>,
    %c0_52 = arith.constant 0 : index
    %c24 = arith.constant 24 : index
    %80 = vector.load %arg6[%c0_52, %c24] : memref<64x96xf32, #tpu.memory_space<vmem>>, vector<64x8xf32>
    %81 = vector.shape_cast %80 : vector<64x8xf32> to vector<4x16x8xf32>
    %c0_53 = arith.constant 0 : index
    %c56 = arith.constant 56 : index
    %82 = vector.load %arg6[%c0_53, %c56] : memref<64x96xf32, #tpu.memory_space<vmem>>, vector<64x8xf32>
    %83 = vector.shape_cast %82 : vector<64x8xf32> to vector<4x16x8xf32>
    %c0_54 = arith.constant 0 : index
    %c88 = arith.constant 88 : index
    %84 = vector.load %arg6[%c0_54, %c88] : memref<64x96xf32, #tpu.memory_space<vmem>>, vector<64x8xf32>
    %85 = vector.shape_cast %84 : vector<64x8xf32> to vector<4x16x8xf32>
    "tpu.trace_start"() <{level = 10 : i32, message = "bnd,bmd->bnm"}> : () -> ()
    %cst_55 = arith.constant dense<0.000000e+00> : vector<4x16x16xf32>
    %86 = tpu.matmul %81, %83, %cst_55 {dimension_numbers = #tpu.dot_dimension_numbers<[2], [2], [1], [1], [0, 0, 0, 1, 1, 1], [0], [0]>} : vector<4x16x8xf32>, vector<4x16x8xf32>, vector<4x16x16xf32> -> vector<4x16x16xf32>
    "tpu.trace_stop"() : () -> ()
    %cst_56 = arith.constant dense<0xFF800000> : vector<4x16xf32>
    %87 = vector.multi_reduction <maximumf>, %86, %cst_56 [2] : vector<4x16x16xf32> to vector<4x16xf32>
    %88 = vector.shape_cast %87 : vector<4x16xf32> to vector<4x16x1xf32>
    %89 = vector.broadcast %88 : vector<4x16x1xf32> to vector<4x16x16xf32>
    %90 = arith.subf %86, %89 : vector<4x16x16xf32>
    %91 = math.exp %90 : vector<4x16x16xf32>
    %cst_57 = arith.constant dense<0.000000e+00> : vector<4x16xf32>
    %92 = vector.multi_reduction <add>, %91, %cst_57 [2] : vector<4x16x16xf32> to vector<4x16xf32>
    %93 = vector.shape_cast %92 : vector<4x16xf32> to vector<4x16x1xf32>
    "tpu.trace_start"() <{level = 10 : i32, message = "bnm,bmd->bnd"}> : () -> ()
    %cst_58 = arith.constant dense<0.000000e+00> : vector<4x16x8xf32>
    %94 = tpu.matmul %91, %85, %cst_58 {dimension_numbers = #tpu.dot_dimension_numbers<[2], [1], [1], [2], [0, 0, 0, 1, 1, 2], [0], [0]>} : vector<4x16x16xf32>, vector<4x16x8xf32>, vector<4x16x8xf32> -> vector<4x16x8xf32>
    "tpu.trace_stop"() : () -> ()
    %95 = tpu.reciprocal %93 {approx = true} : vector<4x16x1xf32> -> vector<4x16x1xf32>
    %96 = vector.broadcast %95 : vector<4x16x1xf32> to vector<4x16x8xf32>
    %97 = arith.mulf %94, %96 : vector<4x16x8xf32>
    %c0_59 = arith.constant 0 : index
    %c0_60 = arith.constant 0 : index
    %98 = vector.load %arg7[%c0_59, %c0_60] : memref<64x32xf32, #tpu.memory_space<vmem>>, vector<64x32xf32>
    %99 = vector.shape_cast %97 : vector<4x16x8xf32> to vector<64x8xf32>
    %c24_61 = arith.constant 24 : index
    %c0_62 = arith.constant 0 : index
    %100 = vector.load %arg3[%c24_61, %c0_62] : memref<32x32xf32, #tpu.memory_space<vmem>>, vector<8x32xf32>
    %cst_63 = arith.constant dense<0.000000e+00> : vector<64x32xf32>
    %101 = tpu.matmul %99, %100, %cst_63 {dimension_numbers = #tpu.dot_dimension_numbers<[1], [0], [0], [1], [0, 0, 1, 1], [], []>} : vector<64x8xf32>, vector<8x32xf32>, vector<64x32xf32> -> vector<64x32xf32>
    %102 = arith.addf %98, %101 : vector<64x32xf32>
    %c0_64 = arith.constant 0 : index
    %c0_65 = arith.constant 0 : index
    %103 = vector.load %arg7[%c0_64, %c0_65] : memref<64x32xf32, #tpu.memory_space<vmem>>, vector<64x32xf32>
    tpu.vector_store %arg7[%c0_64, %c0_65], %102 {strides = array<i32>} : memref<64x32xf32, #tpu.memory_space<vmem>>, vector<64x32xf32>,
    %c0_66 = arith.constant 0 : index
    %c0_67 = arith.constant 0 : index
    %104 = vector.load %arg7[%c0_66, %c0_67] : memref<64x32xf32, #tpu.memory_space<vmem>>, vector<64x32xf32>
    %c0_68 = arith.constant 0 : index
    %c0_69 = arith.constant 0 : index
    %105 = vector.load %arg5[%c0_68, %c0_69] : memref<64x32xf32, #tpu.memory_space<vmem>>, vector<64x32xf32>
    tpu.vector_store %arg5[%c0_68, %c0_69], %104 {strides = array<i32>} : memref<64x32xf32, #tpu.memory_space<vmem>>, vector<64x32xf32>,
    return
  }
  func.func @transform_0(%arg0: i32) -> (i32, i32) {
    %c0_i32 = arith.constant 0 : i32
    %c0_i32_0 = arith.constant 0 : i32
    return %arg0, %c0_i32 : i32, i32
  }
  func.func @transform_1(%arg0: i32) -> (i32, i32) {
    %c0_i32 = arith.constant 0 : i32
    %c0_i32_0 = arith.constant 0 : i32
    %c0_i32_1 = arith.constant 0 : i32
    return %c0_i32, %c0_i32_0 : i32, i32
  }
  func.func @transform_2(%arg0: i32) -> (i32, i32) {
    %c0_i32 = arith.constant 0 : i32
    %c0_i32_0 = arith.constant 0 : i32
    %c0_i32_1 = arith.constant 0 : i32
    return %c0_i32, %c0_i32_0 : i32, i32
  }
  func.func @transform_3(%arg0: i32) -> (i32, i32) {
    %c0_i32 = arith.constant 0 : i32
    %c0_i32_0 = arith.constant 0 : i32
    %c0_i32_1 = arith.constant 0 : i32
    return %c0_i32, %c0_i32_0 : i32, i32
  }
  func.func @transform_4(%arg0: i32) -> (i32, i32) {
    %c0_i32 = arith.constant 0 : i32
    %c0_i32_0 = arith.constant 0 : i32
    return %arg0, %c0_i32 : i32, i32
  }
}

</mosaic_0001>

<llo_original>
// kernel: tpu_custom_call.1
$region0: #{tpu_custom_call.1}
  #allocation0 [shape = 'u32[]', space=smem, size = 0x4, offset = 0x4, fixed_abs, tag = 'smem constant byte address 0x4 - core index']
  #allocation1 [shape = 'u32[72,128]{1,0:T(1,128)}', space=vmem, size = 0x9000, scoped, tag = 'internal scratch']
  #allocation2 [shape = 'f32[64,96]{1,0:T(8,128)}', space=vmem, size = 0x8000, scoped, tag = 'scratch operand']
  #allocation3 [shape = 'f32[64,32]{1,0:T(8,128)}', space=vmem, size = 0x8000, scoped, tag = 'scratch operand']
  %s0 = inlined_call_operand.vmem [shape: f32[128,32], index: 0, kind: input, shape index: {}]
  %s1 = inlined_call_operand.vmem [shape: f32[32,96], index: 1, kind: input, shape index: {}]
  %s2 = inlined_call_operand.vmem [shape: f32[32,32], index: 2, kind: input, shape index: {}]
  %s3 = inlined_call_operand.vmem [shape: f32[1,32], index: 3, kind: input, shape index: {}]
  %s4 = inlined_call_operand.vmem [shape: f32[128,32], index: 4, kind: output, shape index: {}]
  %s5 = sld [smem:[#allocation0]]
  $region49: #{tpu_custom_call.1} parent=0
    _
  %s7 = ssub.s32 1, %s5
  %s8 = scalar_select 0, %s7, %s5
  loop: start=0, step=1, limit=4
  $region2: #{tpu_custom_call.1} parent=0 // loop_pre_header
    _
  $region3: #{tpu_custom_call.1} parent=0 // loop_header
    %s10 = sphi 0, %s14
    %p11 = scmp.ge.s32.totalorder %s10, 4
    %s20 = sphi 0, %s22
    %s23 = sphi 0, %s20
    %s24 = sphi 0, %s23
    %s40 = sphi 0, %s24
    %s44 = sphi 0, %s44
    %s46 = sphi 0, %s44
    %s47 = sphi 0, %s46
    %s61 = sphi 0, %s47
    %s65 = sphi 0, %s65
    %s67 = sphi 0, %s65
    %s68 = sphi 0, %s67
    %s82 = sphi 0, %s68
    %s86 = sphi 0, %s86
    %s88 = sphi 0, %s86
    %s89 = sphi 0, %s88
    %s103 = sphi 0, %s89
    %s109 = sphi 0, %s111
    %s112 = sphi 0, %s109
    %s113 = sphi 0, %s112
    %s129 = sphi 0, %s113
  $region4: #{tpu_custom_call.1} parent=0 // loop_header_branch
    %13 = sbr.rel (%p11) target = $region8
  $region5: #{tpu_custom_call.1} parent=0 // loop_body
    %s15 = ssub.s32 %s10, 1
    %s16 = ssub.s32 %s10, 2
    %s17 = sadd.s32 %s10, 1
    %s18 = ssub.s32 %s10, %s17
    %p19 = scmp.eq.s32.totalorder %s18, 0
    %s21 = sadd.s32 %s20, 1
    %s22 = scalar_select %p19, %s20, %s21
    %p25 = pneg %p19
    %p26 = scmp.eq.s32.totalorder %s10, 1
    %p27 = por %p25, %p26
    %p28 = scmp.ne.s32.totalorder %s20, %s23
    %p29 = scmp.eq.s32.totalorder %s10, 0
    %p30 = por %p28, %p29
    %p31 = scmp.ne.s32.totalorder %s20, %s23
    %p32 = scmp.eq.s32.totalorder %s15, 1
    %p33 = por %p31, %p32
    %p34 = scmp.ne.s32.totalorder %s23, %s24
    %p35 = scmp.eq.s32.totalorder %s15, 0
    %p36 = por %p34, %p35
    %p37 = scmp.ne.s32.totalorder %s23, %s24
    %p38 = scmp.eq.s32.totalorder %s16, 1
    %p39 = por %p37, %p38
    %p41 = scmp.ne.s32.totalorder %s24, %s40
    %p42 = scmp.eq.s32.totalorder %s16, 0
    %p43 = por %p41, %p42
    %s45 = sadd.s32 %s44, 1
    %p48 = scmp.eq.s32.totalorder %s10, 1
    %p49 = scmp.ne.s32.totalorder %s44, %s46
    %p50 = scmp.eq.s32.totalorder %s10, 0
    %p51 = por %p49, %p50
    %p52 = scmp.ne.s32.totalorder %s44, %s46
    %p53 = scmp.eq.s32.totalorder %s15, 1
    %p54 = por %p52, %p53
    %p55 = scmp.ne.s32.totalorder %s46, %s47
    %p56 = scmp.eq.s32.totalorder %s15, 0
    %p57 = por %p55, %p56
    %p58 = scmp.ne.s32.totalorder %s46, %s47
    %p59 = scmp.eq.s32.totalorder %s16, 1
    %p60 = por %p58, %p59
    %p62 = scmp.ne.s32.totalorder %s47, %s61
    %p63 = scmp.eq.s32.totalorder %s16, 0
    %p64 = por %p62, %p63
    %s66 = sadd.s32 %s65, 1
    %p69 = scmp.eq.s32.totalorder %s10, 1
    %p70 = scmp.ne.s32.totalorder %s65, %s67
    %p71 = scmp.eq.s32.totalorder %s10, 0
    %p72 = por %p70, %p71
    %p73 = scmp.ne.s32.totalorder %s65, %s67
    %p74 = scmp.eq.s32.totalorder %s15, 1
    %p75 = por %p73, %p74
    %p76 = scmp.ne.s32.totalorder %s67, %s68
    %p77 = scmp.eq.s32.totalorder %s15, 0
    %p78 = por %p76, %p77
    %p79 = scmp.ne.s32.totalorder %s67, %s68
    %p80 = scmp.eq.s32.totalorder %s16, 1
    %p81 = por %p79, %p80
    %p83 = scmp.ne.s32.totalorder %s68, %s82
    %p84 = scmp.eq.s32.totalorder %s16, 0
    %p85 = por %p83, %p84
    %s87 = sadd.s32 %s86, 1
    %p90 = scmp.eq.s32.totalorder %s10, 1
    %p91 = scmp.ne.s32.totalorder %s86, %s88
    %p92 = scmp.eq.s32.totalorder %s10, 0
    %p93 = por %p91, %p92
    %p94 = scmp.ne.s32.totalorder %s86, %s88
    %p95 = scmp.eq.s32.totalorder %s15, 1
    %p96 = por %p94, %p95
    %p97 = scmp.ne.s32.totalorder %s88, %s89
    %p98 = scmp.eq.s32.totalorder %s15, 0
    %p99 = por %p97, %p98
    %p100 = scmp.ne.s32.totalorder %s88, %s89
    %p101 = scmp.eq.s32.totalorder %s16, 1
    %p102 = por %p100, %p101
    %p104 = scmp.ne.s32.totalorder %s89, %s103
    %p105 = scmp.eq.s32.totalorder %s16, 0
    %p106 = por %p104, %p105
    %s107 = ssub.s32 %s10, %s17
    %p108 = scmp.eq.s32.totalorder %s107, 0
    %s110 = sadd.s32 %s109, 1
    %s111 = scalar_select %p108, %s109, %s110
    %p114 = pneg %p108
    %p115 = scmp.eq.s32.totalorder %s10, 1
    %p116 = por %p114, %p115
    %p117 = scmp.ne.s32.totalorder %s109, %s112
    %p118 = scmp.eq.s32.totalorder %s10, 0
    %p119 = por %p117, %p118
    %p120 = scmp.ne.s32.totalorder %s109, %s112
    %p121 = scmp.eq.s32.totalorder %s15, 1
    %p122 = por %p120, %p121
    %p123 = scmp.ne.s32.totalorder %s112, %s113
    %p124 = scmp.eq.s32.totalorder %s15, 0
    %p125 = por %p123, %p124
    %p126 = scmp.ne.s32.totalorder %s112, %s113
    %p127 = scmp.eq.s32.totalorder %s16, 1
    %p128 = por %p126, %p127
    %p130 = scmp.ne.s32.totalorder %s113, %s129
    %p131 = scmp.eq.s32.totalorder %s16, 0
    %p132 = por %p130, %p131
    %p133 = scmp.le.s32.totalorder 1, %s10
    %p134 = scmp.lt.s32.totalorder %s10, 3
    %p135 = pnand %p133, %p134
    %p136 = pneg %p135
    // Predicated region
    $region9: #{tpu_custom_call.1} parent=5 // pred_check
      _
    $region10: #{tpu_custom_call.1} parent=5 // pred_check_branch
      %138 = sbr.rel (%p135) target = $region12
    $region11: #{tpu_custom_call.1} parent=5 // pred_region
      %s139 = ssub.s32 %s10, 1
      // Predicated region
      $region13: #{tpu_custom_call.1} parent=11 // pred_check
        %p140 = pneg %p57
      $region14: #{tpu_custom_call.1} parent=11 // pred_check_branch
        %142 = sbr.rel (%p140) target = $region16
      $region15: #{tpu_custom_call.1} parent=11 // pred_region
        _
      $region16: #{tpu_custom_call.1} parent=11 // pred_fallthru
        _
      // Predicated region
      $region17: #{tpu_custom_call.1} parent=11 // pred_check
        %p143 = pneg %p78
      $region18: #{tpu_custom_call.1} parent=11 // pred_check_branch
        %145 = sbr.rel (%p143) target = $region20
      $region19: #{tpu_custom_call.1} parent=11 // pred_region
        _
      $region20: #{tpu_custom_call.1} parent=11 // pred_fallthru
        _
      // Predicated region
      $region21: #{tpu_custom_call.1} parent=11 // pred_check
        %p146 = pneg %p99
      $region22: #{tpu_custom_call.1} parent=11 // pred_check_branch
        %148 = sbr.rel (%p146) target = $region24
      $region23: #{tpu_custom_call.1} parent=11 // pred_region
        _
      $region24: #{tpu_custom_call.1} parent=11 // pred_fallthru
        _
    $region12: #{tpu_custom_call.1} parent=5 // pred_fallthru
      _
    %p149 = scmp.lt.s32.totalorder %s10, 2
    // Predicated region
    $region25: #{tpu_custom_call.1} parent=5 // pred_check
      %p150 = pneg %p149
    $region26: #{tpu_custom_call.1} parent=5 // pred_check_branch
      %152 = sbr.rel (%p150) target = $region28
    $region27: #{tpu_custom_call.1} parent=5 // pred_region
      // Predicated region
      $region29: #{tpu_custom_call.1} parent=27 // pred_check
        %p153 = pneg %p30
      $region30: #{tpu_custom_call.1} parent=27 // pred_check_branch
        %155 = sbr.rel (%p153) target = $region32
      $region31: #{tpu_custom_call.1} parent=27 // pred_region
        %s156 = smul.u32 8, %s10
        %p157 = scmp.lt.s32.totalorder %s156, 15
        %s158 = scalar_select %p157, %s156, 15
        %s159 = smul.addr %s158, 8
        %s160 = scalar_lea.vmem %s0, %s159
        %s161 = smul.u32 8, %s10
      $region32: #{tpu_custom_call.1} parent=27 // pred_fallthru
        _
    $region28: #{tpu_custom_call.1} parent=5 // pred_fallthru
      _
    %p162 = scmp.le.s32.totalorder 1, %s10
    %p163 = scmp.lt.s32.totalorder %s10, 3
    %p164 = pnand %p162, %p163
    %p165 = pneg %p164
    // Predicated region
    $region33: #{tpu_custom_call.1} parent=5 // pred_check
      _
    $region34: #{tpu_custom_call.1} parent=5 // pred_check_branch
      %167 = sbr.rel (%p164) target = $region36
    $region35: #{tpu_custom_call.1} parent=5 // pred_region
      %s168 = ssub.s32 %s10, 1
      %s169 = smul.u32 8, %s15
      %p170 = scmp.lt.s32.totalorder %s169, 15
      %s171 = scalar_select %p170, %s169, 15
      %s172 = smul.addr %s171, 8
      %s173 = scalar_lea.vmem %s0, %s172
      %p174 = pneg %p36
      %p175 = pneg %p33
      %p176 = pneg %p57
      %p177 = pneg %p54
      %p178 = pneg %p78
      %p179 = pneg %p75
      %p180 = pneg %p99
      %p181 = pneg %p96
      %p182 = pneg %p125
      %p183 = pneg %p122
      %s184 = smul.u32 8, %s15
      %p185 = scmp.lt.s32.totalorder %s184, 15
      %s186 = scalar_select %p185, %s184, 15
      %s187 = smul.addr %s186, 8
      %s188 = scalar_lea.vmem %s4, %s187
      %s189 = smul.u32 8, %s15
      %p190 = scmp.lt.s32.totalorder %s189, 15
      %s191 = scalar_select %p190, %s189, 15
      %s192 = smul.addr %s191, 8
      %s193 = scalar_lea.vmem %s0, %s192
      %s194 = smul.u32 8, %s15
      %s195 = smul.u32 8, %s15
      %p196 = scmp.lt.s32.totalorder %s195, 15
      %s197 = scalar_select %p196, %s195, 15
      %s198 = smul.addr %s197, 8
      %s199 = scalar_lea.vmem %s4, %s198
      %s200 = smul.u32 8, %s15
      %v201 = vld [vmem:[%s193] sm:$0xff]
      %v202 = vld [vmem:[%s193 + $0x8] sm:$0xff]
      %v203 = vld [vmem:[%s193 + $0x10] sm:$0xff]
      %v204 = vld [vmem:[%s193 + $0x18] sm:$0xff]
      %v205 = vld [vmem:[%s193 + $0x20] sm:$0xff]
      %v206 = vld [vmem:[%s193 + $0x28] sm:$0xff]
      %v207 = vld [vmem:[%s193 + $0x30] sm:$0xff]
      %v208 = vld [vmem:[%s193 + $0x38] sm:$0xff]
      %v209 = vld [vmem:[%s1] sm:$0xff]
      %v210 = vld [vmem:[%s1 + $0x8] sm:$0xff]
      %v211 = vld [vmem:[%s1 + $0x10] sm:$0xff]
      %v212 = vld [vmem:[%s1 + $0x18] sm:$0xff]
      %vm213 = vcmask 261120
      %v215 = vsel %vm213, %v201, 0
      %v218 = vsel %vm213, %v202, 0
      %v221 = vsel %vm213, %v203, 0
      %v224 = vsel %vm213, %v204, 0
      %v227 = vsel %vm213, %v205, 0
      %v230 = vsel %vm213, %v206, 0
      %v233 = vsel %vm213, %v207, 0
      %v236 = vsel %vm213, %v208, 0
      %238 = vmatpush.msra.mxu0 0.0
      %239 = vmatpush.msra.mxu0 0.0
      %240 = vmatpush.msra.mxu0 0.0
      %241 = vmatpush.msra.mxu0 0.0
      %242 = vmatpush.msra.mxu0 0.0
      %243 = vmatpush.msra.mxu0 0.0
      %244 = vmatpush.msra.mxu0 0.0
      %245 = vmatpush.msra.mxu0 0.0
      %246 = vmatpush.msra.mxu0 0.0
      %247 = vmatpush.msra.mxu0 0.0
      %248 = vmatpush.msra.mxu0 0.0
      %249 = vmatpush.msra.mxu0 0.0
      %250 = vmatpush.msra.mxu0 %v212
      %251 = vmatpush.msra.mxu0 %v211
      %252 = vmatpush.msra.mxu0 %v210
      %253 = vmatpush.msra.mxu0 %v209
      %254 = vmatmul.f32.gmra.mxu0 %v215
      %v255 = vpop.f32.mrf.mxu0
      %v256 = vadd.f32 0.0, %v255
      %257 = vmatmul.f32.gmra.mxu0 %v218
      %v258 = vpop.f32.mrf.mxu0
      %v259 = vadd.f32 0.0, %v258
      %260 = vmatmul.f32.gmra.mxu0 %v221
      %v261 = vpop.f32.mrf.mxu0
      %v262 = vadd.f32 0.0, %v261
      %263 = vmatmul.f32.gmra.mxu0 %v224
      %v264 = vpop.f32.mrf.mxu0
      %v265 = vadd.f32 0.0, %v264
      %266 = vmatmul.f32.gmra.mxu0 %v227
      %v267 = vpop.f32.mrf.mxu0
      %v268 = vadd.f32 0.0, %v267
      %269 = vmatmul.f32.gmra.mxu0 %v230
      %v270 = vpop.f32.mrf.mxu0
      %v271 = vadd.f32 0.0, %v270
      %272 = vmatmul.f32.gmra.mxu0 %v233
      %v273 = vpop.f32.mrf.mxu0
      %v274 = vadd.f32 0.0, %v273
      %275 = vmatmul.f32.gmra.mxu0 %v236
      %v276 = vpop.f32.mrf.mxu0
      %v277 = vadd.f32 0.0, %v276
      %278 = vdwg.mxu0
      %vm279 = vcmask 785408
      %280 = vst.msk [vmem:[#allocation2] sm:$0xff] %vm279, %v256
      %281 = vst.msk [vmem:[#allocation2 + $0x8] sm:$0xff] %vm279, %v259
      %282 = vst.msk [vmem:[#allocation2 + $0x10] sm:$0xff] %vm279, %v262
      %283 = vst.msk [vmem:[#allocation2 + $0x18] sm:$0xff] %vm279, %v265
      %284 = vst.msk [vmem:[#allocation2 + $0x20] sm:$0xff] %vm279, %v268
      %285 = vst.msk [vmem:[#allocation2 + $0x28] sm:$0xff] %vm279, %v271
      %286 = vst.msk [vmem:[#allocation2 + $0x30] sm:$0xff] %vm279, %v274
      %287 = vst.msk [vmem:[#allocation2 + $0x38] sm:$0xff] %vm279, %v277
      %v288 = vld [vmem:[%s3] sm:$0x1]
      %v290 = vperm.slane %v288, 0
      %292 = vst.msk [vmem:[#allocation3] sm:$0xff] %vm213, %v290
      %293 = vst.msk [vmem:[#allocation3 + $0x8] sm:$0xff] %vm213, %v290
      %294 = vst.msk [vmem:[#allocation3 + $0x10] sm:$0xff] %vm213, %v290
      %295 = vst.msk [vmem:[#allocation3 + $0x18] sm:$0xff] %vm213, %v290
      %296 = vst.msk [vmem:[#allocation3 + $0x20] sm:$0xff] %vm213, %v290
      %297 = vst.msk [vmem:[#allocation3 + $0x28] sm:$0xff] %vm213, %v290
      %298 = vst.msk [vmem:[#allocation3 + $0x30] sm:$0xff] %vm213, %v290
      %299 = vst.msk [vmem:[#allocation3 + $0x38] sm:$0xff] %vm213, %v290
      %v300 = vld [vmem:[#allocation2] sm:$0xff]
      %v301 = vld [vmem:[#allocation2 + $0x8] sm:$0xff]
      %v302 = vld [vmem:[#allocation2 + $0x10] sm:$0xff]
      %v303 = vld [vmem:[#allocation2 + $0x18] sm:$0xff]
      %v304 = vld [vmem:[#allocation2 + $0x20] sm:$0xff]
      %v305 = vld [vmem:[#allocation2 + $0x28] sm:$0xff]
      %v306 = vld [vmem:[#allocation2 + $0x30] sm:$0xff]
      %v307 = vld [vmem:[#allocation2 + $0x38] sm:$0xff]
      %310 = vrot.lane.b32.xlu0 %v300, 96
      %v311 = vpop.permute.xlu0 %310
      %312 = vrot.lane.b32.xlu0 %v301, 96
      %v313 = vpop.permute.xlu0 %312
      %vm314 = vcmask 64512
      %v315 = vsel %vm314, %v300, 0
      %v317 = vsel %vm314, %v301, 0
      %v319 = vsel %vm314, %v311, 0
      %v321 = vsel %vm314, %v313, 0
      %323 = vmatpush.xpose.msra.mxu0 0.0
      %324 = vmatpush.xpose.msra.mxu0 0.0
      %325 = vmatpush.xpose.msra.mxu0 0.0
      %326 = vmatpush.xpose.msra.mxu0 0.0
      %327 = vmatpush.xpose.msra.mxu0 0.0
      %328 = vmatpush.xpose.msra.mxu0 0.0
      %329 = vmatpush.xpose.msra.mxu0 0.0
      %330 = vmatpush.xpose.msra.mxu0 0.0
      %331 = vmatpush.xpose.msra.mxu0 0.0
      %332 = vmatpush.xpose.msra.mxu0 0.0
      %333 = vmatpush.xpose.msra.mxu0 0.0
      %334 = vmatpush.xpose.msra.mxu0 0.0
      %335 = vmatpush.xpose.msra.mxu0 0.0
      %336 = vmatpush.xpose.msra.mxu0 0.0
      %337 = vmatpush.xpose.msra.mxu0 %v321
      %338 = vmatpush.xpose.msra.mxu0 %v319
      %339 = vmatmul.f32.gmra.mxu0 %v315
      %v340 = vpop.f32.mrf.mxu0
      %v341 = vadd.f32 0.0, %v340
      %342 = vmatmul.f32.gmra.mxu0 %v317
      %v343 = vpop.f32.mrf.mxu0
      %v344 = vadd.f32 0.0, %v343
      %345 = vdwg.mxu0
      %348 = vrot.lane.b32.xlu0 %v302, 96
      %v349 = vpop.permute.xlu0 %348
      %350 = vrot.lane.b32.xlu0 %v303, 96
      %v351 = vpop.permute.xlu0 %350
      %v352 = vsel %vm314, %v302, 0
      %v354 = vsel %vm314, %v303, 0
      %v356 = vsel %vm314, %v349, 0
      %v358 = vsel %vm314, %v351, 0
      %360 = vmatpush.xpose.msra.mxu0 0.0
      %361 = vmatpush.xpose.msra.mxu0 0.0
      %362 = vmatpush.xpose.msra.mxu0 0.0
      %363 = vmatpush.xpose.msra.mxu0 0.0
      %364 = vmatpush.xpose.msra.mxu0 0.0
      %365 = vmatpush.xpose.msra.mxu0 0.0
      %366 = vmatpush.xpose.msra.mxu0 0.0
      %367 = vmatpush.xpose.msra.mxu0 0.0
      %368 = vmatpush.xpose.msra.mxu0 0.0
      %369 = vmatpush.xpose.msra.mxu0 0.0
      %370 = vmatpush.xpose.msra.mxu0 0.0
      %371 = vmatpush.xpose.msra.mxu0 0.0
      %372 = vmatpush.xpose.msra.mxu0 0.0
      %373 = vmatpush.xpose.msra.mxu0 0.0
      %374 = vmatpush.xpose.msra.mxu0 %v358
      %375 = vmatpush.xpose.msra.mxu0 %v356
      %376 = vmatmul.f32.gmra.mxu0 %v352
      %v377 = vpop.f32.mrf.mxu0
      %v378 = vadd.f32 0.0, %v377
      %379 = vmatmul.f32.gmra.mxu0 %v354
      %v380 = vpop.f32.mrf.mxu0
      %v381 = vadd.f32 0.0, %v380
      %382 = vdwg.mxu0
      %385 = vrot.lane.b32.xlu0 %v304, 96
      %v386 = vpop.permute.xlu0 %385
      %387 = vrot.lane.b32.xlu0 %v305, 96
      %v388 = vpop.permute.xlu0 %387
      %v389 = vsel %vm314, %v304, 0
      %v391 = vsel %vm314, %v305, 0
      %v393 = vsel %vm314, %v386, 0
      %v395 = vsel %vm314, %v388, 0
      %397 = vmatpush.xpose.msra.mxu0 0.0
      %398 = vmatpush.xpose.msra.mxu0 0.0
      %399 = vmatpush.xpose.msra.mxu0 0.0
      %400 = vmatpush.xpose.msra.mxu0 0.0
      %401 = vmatpush.xpose.msra.mxu0 0.0
      %402 = vmatpush.xpose.msra.mxu0 0.0
      %403 = vmatpush.xpose.msra.mxu0 0.0
      %404 = vmatpush.xpose.msra.mxu0 0.0
      %405 = vmatpush.xpose.msra.mxu0 0.0
      %406 = vmatpush.xpose.msra.mxu0 0.0
      %407 = vmatpush.xpose.msra.mxu0 0.0
      %408 = vmatpush.xpose.msra.mxu0 0.0
      %409 = vmatpush.xpose.msra.mxu0 0.0
      %410 = vmatpush.xpose.msra.mxu0 0.0
      %411 = vmatpush.xpose.msra.mxu0 %v395
      %412 = vmatpush.xpose.msra.mxu0 %v393
      %413 = vmatmul.f32.gmra.mxu0 %v389
      %v414 = vpop.f32.mrf.mxu0
      %v415 = vadd.f32 0.0, %v414
      %416 = vmatmul.f32.gmra.mxu0 %v391
      %v417 = vpop.f32.mrf.mxu0
      %v418 = vadd.f32 0.0, %v417
      %419 = vdwg.mxu0
      %422 = vrot.lane.b32.xlu0 %v306, 96
      %v423 = vpop.permute.xlu0 %422
      %424 = vrot.lane.b32.xlu0 %v307, 96
      %v425 = vpop.permute.xlu0 %424
      %v426 = vsel %vm314, %v306, 0
      %v428 = vsel %vm314, %v307, 0
      %v430 = vsel %vm314, %v423, 0
      %v432 = vsel %vm314, %v425, 0
      %434 = vmatpush.xpose.msra.mxu0 0.0
      %435 = vmatpush.xpose.msra.mxu0 0.0
      %436 = vmatpush.xpose.msra.mxu0 0.0
      %437 = vmatpush.xpose.msra.mxu0 0.0
      %438 = vmatpush.xpose.msra.mxu0 0.0
      %439 = vmatpush.xpose.msra.mxu0 0.0
      %440 = vmatpush.xpose.msra.mxu0 0.0
      %441 = vmatpush.xpose.msra.mxu0 0.0
      %442 = vmatpush.xpose.msra.mxu0 0.0
      %443 = vmatpush.xpose.msra.mxu0 0.0
      %444 = vmatpush.xpose.msra.mxu0 0.0
      %445 = vmatpush.xpose.msra.mxu0 0.0
      %446 = vmatpush.xpose.msra.mxu0 0.0
      %447 = vmatpush.xpose.msra.mxu0 0.0
      %448 = vmatpush.xpose.msra.mxu0 %v432
      %449 = vmatpush.xpose.msra.mxu0 %v430
      %450 = vmatmul.f32.gmra.mxu0 %v426
      %v451 = vpop.f32.mrf.mxu0
      %v452 = vadd.f32 0.0, %v451
      %453 = vmatmul.f32.gmra.mxu0 %v428
      %v454 = vpop.f32.mrf.mxu0
      %v455 = vadd.f32 0.0, %v454
      %456 = vdwg.mxu0
      %vm457 = vcmask 130048
      %v458 = vsel %vm457, %v341, -inf
      %459 = vmax.xlane.f32.xlu0 %v458
      %v460 = vpop.xlane.xlu0 %459
      %v461 = vsel %vm457, %v344, -inf
      %462 = vmax.xlane.f32.xlu0 %v461
      %v463 = vpop.xlane.xlu0 %462
      %v464 = vsel %vm457, %v378, -inf
      %465 = vmax.xlane.f32.xlu0 %v464
      %v466 = vpop.xlane.xlu0 %465
      %v467 = vsel %vm457, %v381, -inf
      %468 = vmax.xlane.f32.xlu0 %v467
      %v469 = vpop.xlane.xlu0 %468
      %v470 = vsel %vm457, %v415, -inf
      %471 = vmax.xlane.f32.xlu0 %v470
      %v472 = vpop.xlane.xlu0 %471
      %v473 = vsel %vm457, %v418, -inf
      %474 = vmax.xlane.f32.xlu0 %v473
      %v475 = vpop.xlane.xlu0 %474
      %v476 = vsel %vm457, %v452, -inf
      %477 = vmax.xlane.f32.xlu0 %v476
      %v478 = vpop.xlane.xlu0 %477
      %v479 = vsel %vm457, %v455, -inf
      %480 = vmax.xlane.f32.xlu0 %v479
      %v481 = vpop.xlane.xlu0 %480
      %v482 = vsub.f32 %v341, %v460
      %v483 = vsub.f32 %v344, %v463
      %v484 = vsub.f32 %v378, %v466
      %v485 = vsub.f32 %v381, %v469
      %v486 = vsub.f32 %v415, %v472
      %v487 = vsub.f32 %v418, %v475
      %v488 = vsub.f32 %v452, %v478
      %v489 = vsub.f32 %v455, %v481
      %v490 = vmul.f32 %v482, 1.442695
      %v491 = vpow.pop %v490
      %v492 = vmul.f32 %v483, 1.442695
      %v493 = vpow.pop %v492
      %v494 = vmul.f32 %v484, 1.442695
      %v495 = vpow.pop %v494
      %v496 = vmul.f32 %v485, 1.442695
      %v497 = vpow.pop %v496
      %v498 = vmul.f32 %v486, 1.442695
      %v499 = vpow.pop %v498
      %v500 = vmul.f32 %v487, 1.442695
      %v501 = vpow.pop %v500
      %v502 = vmul.f32 %v488, 1.442695
      %v503 = vpow.pop %v502
      %v504 = vmul.f32 %v489, 1.442695
      %v505 = vpow.pop %v504
      %v506 = vsel %vm457, %v491, 0.0
      %507 = vadd.xlane.f32.xlu0 %v506
      %v508 = vpop.xlane.xlu0 %507
      %v509 = vsel %vm457, %v493, 0.0
      %510 = vadd.xlane.f32.xlu0 %v509
      %v511 = vpop.xlane.xlu0 %510
      %v512 = vsel %vm457, %v495, 0.0
      %513 = vadd.xlane.f32.xlu0 %v512
      %v514 = vpop.xlane.xlu0 %513
      %v515 = vsel %vm457, %v497, 0.0
      %516 = vadd.xlane.f32.xlu0 %v515
      %v517 = vpop.xlane.xlu0 %516
      %v518 = vsel %vm457, %v499, 0.0
      %519 = vadd.xlane.f32.xlu0 %v518
      %v520 = vpop.xlane.xlu0 %519
      %v521 = vsel %vm457, %v501, 0.0
      %522 = vadd.xlane.f32.xlu0 %v521
      %v523 = vpop.xlane.xlu0 %522
      %v524 = vsel %vm457, %v503, 0.0
      %525 = vadd.xlane.f32.xlu0 %v524
      %v526 = vpop.xlane.xlu0 %525
      %v527 = vsel %vm457, %v505, 0.0
      %528 = vadd.xlane.f32.xlu0 %v527
      %v529 = vpop.xlane.xlu0 %528
      %530 = vrot.lane.b32.xlu0 %v300, 64
      %v531 = vpop.permute.xlu0 %530
      %532 = vrot.lane.b32.xlu0 %v301, 64
      %v533 = vpop.permute.xlu0 %532
      %v537 = vsel %vm457, %v491, 0
      %v540 = vsel %vm457, %v493, 0
      %542 = vmatpush.msra.mxu0 0.0
      %543 = vmatpush.msra.mxu0 0.0
      %544 = vmatpush.msra.mxu0 0.0
      %545 = vmatpush.msra.mxu0 0.0
      %546 = vmatpush.msra.mxu0 0.0
      %547 = vmatpush.msra.mxu0 0.0
      %548 = vmatpush.msra.mxu0 0.0
      %549 = vmatpush.msra.mxu0 0.0
      %550 = vmatpush.msra.mxu0 0.0
      %551 = vmatpush.msra.mxu0 0.0
      %552 = vmatpush.msra.mxu0 0.0
      %553 = vmatpush.msra.mxu0 0.0
      %554 = vmatpush.msra.mxu0 0.0
      %555 = vmatpush.msra.mxu0 0.0
      %556 = vmatpush.msra.mxu0 %v533
      %557 = vmatpush.msra.mxu0 %v531
      %558 = vmatmul.f32.gmra.mxu0 %v537
      %v559 = vpop.f32.mrf.mxu0
      %v560 = vadd.f32 0.0, %v559
      %561 = vmatmul.f32.gmra.mxu0 %v540
      %v562 = vpop.f32.mrf.mxu0
      %v563 = vadd.f32 0.0, %v562
      %564 = vdwg.mxu0
      %565 = vrot.lane.b32.xlu0 %v302, 64
      %v566 = vpop.permute.xlu0 %565
      %567 = vrot.lane.b32.xlu0 %v303, 64
      %v568 = vpop.permute.xlu0 %567
      %v572 = vsel %vm457, %v495, 0
      %v575 = vsel %vm457, %v497, 0
      %577 = vmatpush.msra.mxu0 0.0
      %578 = vmatpush.msra.mxu0 0.0
      %579 = vmatpush.msra.mxu0 0.0
      %580 = vmatpush.msra.mxu0 0.0
      %581 = vmatpush.msra.mxu0 0.0
      %582 = vmatpush.msra.mxu0 0.0
      %583 = vmatpush.msra.mxu0 0.0
      %584 = vmatpush.msra.mxu0 0.0
      %585 = vmatpush.msra.mxu0 0.0
      %586 = vmatpush.msra.mxu0 0.0
      %587 = vmatpush.msra.mxu0 0.0
      %588 = vmatpush.msra.mxu0 0.0
      %589 = vmatpush.msra.mxu0 0.0
      %590 = vmatpush.msra.mxu0 0.0
      %591 = vmatpush.msra.mxu0 %v568
      %592 = vmatpush.msra.mxu0 %v566
      %593 = vmatmul.f32.gmra.mxu0 %v572
      %v594 = vpop.f32.mrf.mxu0
      %v595 = vadd.f32 0.0, %v594
      %596 = vmatmul.f32.gmra.mxu0 %v575
      %v597 = vpop.f32.mrf.mxu0
      %v598 = vadd.f32 0.0, %v597
      %599 = vdwg.mxu0
      %600 = vrot.lane.b32.xlu0 %v304, 64
      %v601 = vpop.permute.xlu0 %600
      %602 = vrot.lane.b32.xlu0 %v305, 64
      %v603 = vpop.permute.xlu0 %602
      %v607 = vsel %vm457, %v499, 0
      %v610 = vsel %vm457, %v501, 0
      %612 = vmatpush.msra.mxu0 0.0
      %613 = vmatpush.msra.mxu0 0.0
      %614 = vmatpush.msra.mxu0 0.0
      %615 = vmatpush.msra.mxu0 0.0
      %616 = vmatpush.msra.mxu0 0.0
      %617 = vmatpush.msra.mxu0 0.0
      %618 = vmatpush.msra.mxu0 0.0
      %619 = vmatpush.msra.mxu0 0.0
      %620 = vmatpush.msra.mxu0 0.0
      %621 = vmatpush.msra.mxu0 0.0
      %622 = vmatpush.msra.mxu0 0.0
      %623 = vmatpush.msra.mxu0 0.0
      %624 = vmatpush.msra.mxu0 0.0
      %625 = vmatpush.msra.mxu0 0.0
      %626 = vmatpush.msra.mxu0 %v603
      %627 = vmatpush.msra.mxu0 %v601
      %628 = vmatmul.f32.gmra.mxu0 %v607
      %v629 = vpop.f32.mrf.mxu0
      %v630 = vadd.f32 0.0, %v629
      %631 = vmatmul.f32.gmra.mxu0 %v610
      %v632 = vpop.f32.mrf.mxu0
      %v633 = vadd.f32 0.0, %v632
      %634 = vdwg.mxu0
      %635 = vrot.lane.b32.xlu0 %v306, 64
      %v636 = vpop.permute.xlu0 %635
      %637 = vrot.lane.b32.xlu0 %v307, 64
      %v638 = vpop.permute.xlu0 %637
      %v642 = vsel %vm457, %v503, 0
      %v645 = vsel %vm457, %v505, 0
      %647 = vmatpush.msra.mxu0 0.0
      %648 = vmatpush.msra.mxu0 0.0
      %649 = vmatpush.msra.mxu0 0.0
      %650 = vmatpush.msra.mxu0 0.0
      %651 = vmatpush.msra.mxu0 0.0
      %652 = vmatpush.msra.mxu0 0.0
      %653 = vmatpush.msra.mxu0 0.0
      %654 = vmatpush.msra.mxu0 0.0
      %655 = vmatpush.msra.mxu0 0.0
      %656 = vmatpush.msra.mxu0 0.0
      %657 = vmatpush.msra.mxu0 0.0
      %658 = vmatpush.msra.mxu0 0.0
      %659 = vmatpush.msra.mxu0 0.0
      %660 = vmatpush.msra.mxu0 0.0
      %661 = vmatpush.msra.mxu0 %v638
      %662 = vmatpush.msra.mxu0 %v636
      %663 = vmatmul.f32.gmra.mxu0 %v642
      %v664 = vpop.f32.mrf.mxu0
      %v665 = vadd.f32 0.0, %v664
      %666 = vmatmul.f32.gmra.mxu0 %v645
      %v667 = vpop.f32.mrf.mxu0
      %v668 = vadd.f32 0.0, %v667
      %669 = vdwg.mxu0
      %v670 = vrcp.pop %v508
      %v671 = vrcp.pop %v511
      %v672 = vrcp.pop %v514
      %v673 = vrcp.pop %v517
      %v674 = vrcp.pop %v520
      %v675 = vrcp.pop %v523
      %v676 = vrcp.pop %v526
      %v677 = vrcp.pop %v529
      %v678 = vmul.f32 %v560, %v670
      %v679 = vmul.f32 %v563, %v671
      %v680 = vmul.f32 %v595, %v672
      %v681 = vmul.f32 %v598, %v673
      %v682 = vmul.f32 %v630, %v674
      %v683 = vmul.f32 %v633, %v675
      %v684 = vmul.f32 %v665, %v676
      %v685 = vmul.f32 %v668, %v677
      %v686 = vld [vmem:[#allocation3] sm:$0xff]
      %v687 = vld [vmem:[#allocation3 + $0x8] sm:$0xff]
      %v688 = vld [vmem:[#allocation3 + $0x10] sm:$0xff]
      %v689 = vld [vmem:[#allocation3 + $0x18] sm:$0xff]
      %v690 = vld [vmem:[#allocation3 + $0x20] sm:$0xff]
      %v691 = vld [vmem:[#allocation3 + $0x28] sm:$0xff]
      %v692 = vld [vmem:[#allocation3 + $0x30] sm:$0xff]
      %v693 = vld [vmem:[#allocation3 + $0x38] sm:$0xff]
      %v694 = vld [vmem:[%s2] sm:$0xff]
      %v696 = vsel %vm314, %v678, 0
      %v699 = vsel %vm314, %v679, 0
      %v702 = vsel %vm314, %v680, 0
      %v705 = vsel %vm314, %v681, 0
      %v708 = vsel %vm314, %v682, 0
      %v711 = vsel %vm314, %v683, 0
      %v714 = vsel %vm314, %v684, 0
      %v717 = vsel %vm314, %v685, 0
      %719 = vmatpush.msra.mxu0 0.0
      %720 = vmatpush.msra.mxu0 0.0
      %721 = vmatpush.msra.mxu0 0.0
      %722 = vmatpush.msra.mxu0 0.0
      %723 = vmatpush.msra.mxu0 0.0
      %724 = vmatpush.msra.mxu0 0.0
      %725 = vmatpush.msra.mxu0 0.0
      %726 = vmatpush.msra.mxu0 0.0
      %727 = vmatpush.msra.mxu0 0.0
      %728 = vmatpush.msra.mxu0 0.0
      %729 = vmatpush.msra.mxu0 0.0
      %730 = vmatpush.msra.mxu0 0.0
      %731 = vmatpush.msra.mxu0 0.0
      %732 = vmatpush.msra.mxu0 0.0
      %733 = vmatpush.msra.mxu0 0.0
      %734 = vmatpush.msra.mxu0 %v694
      %735 = vmatmul.f32.gmra.mxu0 %v696
      %v736 = vpop.f32.mrf.mxu0
      %v737 = vadd.f32 0.0, %v736
      %738 = vmatmul.f32.gmra.mxu0 %v699
      %v739 = vpop.f32.mrf.mxu0
      %v740 = vadd.f32 0.0, %v739
      %741 = vmatmul.f32.gmra.mxu0 %v702
      %v742 = vpop.f32.mrf.mxu0
      %v743 = vadd.f32 0.0, %v742
      %744 = vmatmul.f32.gmra.mxu0 %v705
      %v745 = vpop.f32.mrf.mxu0
      %v746 = vadd.f32 0.0, %v745
      %747 = vmatmul.f32.gmra.mxu0 %v708
      %v748 = vpop.f32.mrf.mxu0
      %v749 = vadd.f32 0.0, %v748
      %750 = vmatmul.f32.gmra.mxu0 %v711
      %v751 = vpop.f32.mrf.mxu0
      %v752 = vadd.f32 0.0, %v751
      %753 = vmatmul.f32.gmra.mxu0 %v714
      %v754 = vpop.f32.mrf.mxu0
      %v755 = vadd.f32 0.0, %v754
      %756 = vmatmul.f32.gmra.mxu0 %v717
      %v757 = vpop.f32.mrf.mxu0
      %v758 = vadd.f32 0.0, %v757
      %759 = vdwg.mxu0
      %v760 = vadd.f32 %v686, %v737
      %v761 = vadd.f32 %v687, %v740
      %v762 = vadd.f32 %v688, %v743
      %v763 = vadd.f32 %v689, %v746
      %v764 = vadd.f32 %v690, %v749
      %v765 = vadd.f32 %v691, %v752
      %v766 = vadd.f32 %v692, %v755
      %v767 = vadd.f32 %v693, %v758
      %768 = vst.msk [vmem:[#allocation3] sm:$0xff] %vm213, %v760
      %769 = vst.msk [vmem:[#allocation3 + $0x8] sm:$0xff] %vm213, %v761
      %770 = vst.msk [vmem:[#allocation3 + $0x10] sm:$0xff] %vm213, %v762
      %771 = vst.msk [vmem:[#allocation3 + $0x18] sm:$0xff] %vm213, %v763
      %772 = vst.msk [vmem:[#allocation3 + $0x20] sm:$0xff] %vm213, %v764
      %773 = vst.msk [vmem:[#allocation3 + $0x28] sm:$0xff] %vm213, %v765
      %774 = vst.msk [vmem:[#allocation3 + $0x30] sm:$0xff] %vm213, %v766
      %775 = vst.msk [vmem:[#allocation3 + $0x38] sm:$0xff] %vm213, %v767
      %v776 = vld [vmem:[#allocation2] sm:$0xff]
      %v777 = vld [vmem:[#allocation2 + $0x8] sm:$0xff]
      %v778 = vld [vmem:[#allocation2 + $0x10] sm:$0xff]
      %v779 = vld [vmem:[#allocation2 + $0x18] sm:$0xff]
      %v780 = vld [vmem:[#allocation2 + $0x20] sm:$0xff]
      %v781 = vld [vmem:[#allocation2 + $0x28] sm:$0xff]
      %v782 = vld [vmem:[#allocation2 + $0x30] sm:$0xff]
      %v783 = vld [vmem:[#allocation2 + $0x38] sm:$0xff]
      %786 = vrot.lane.b32.xlu0 %v776, 120
      %v787 = vpop.permute.xlu0 %786
      %788 = vrot.lane.b32.xlu0 %v777, 120
      %v789 = vpop.permute.xlu0 %788
      %790 = vrot.lane.b32.xlu0 %v776, 88
      %v791 = vpop.permute.xlu0 %790
      %792 = vrot.lane.b32.xlu0 %v777, 88
      %v793 = vpop.permute.xlu0 %792
      %v794 = vsel %vm314, %v787, 0
      %v796 = vsel %vm314, %v789, 0
      %v798 = vsel %vm314, %v791, 0
      %v800 = vsel %vm314, %v793, 0
      %802 = vmatpush.xpose.msra.mxu0 0.0
      %803 = vmatpush.xpose.msra.mxu0 0.0
      %804 = vmatpush.xpose.msra.mxu0 0.0
      %805 = vmatpush.xpose.msra.mxu0 0.0
      %806 = vmatpush.xpose.msra.mxu0 0.0
      %807 = vmatpush.xpose.msra.mxu0 0.0
      %808 = vmatpush.xpose.msra.mxu0 0.0
      %809 = vmatpush.xpose.msra.mxu0 0.0
      %810 = vmatpush.xpose.msra.mxu0 0.0
      %811 = vmatpush.xpose.msra.mxu0 0.0
      %812 = vmatpush.xpose.msra.mxu0 0.0
      %813 = vmatpush.xpose.msra.mxu0 0.0
      %814 = vmatpush.xpose.msra.mxu0 0.0
      %815 = vmatpush.xpose.msra.mxu0 0.0
      %816 = vmatpush.xpose.msra.mxu0 %v800
      %817 = vmatpush.xpose.msra.mxu0 %v798
      %818 = vmatmul.f32.gmra.mxu0 %v794
      %v819 = vpop.f32.mrf.mxu0
      %v820 = vadd.f32 0.0, %v819
      %821 = vmatmul.f32.gmra.mxu0 %v796
      %v822 = vpop.f32.mrf.mxu0
      %v823 = vadd.f32 0.0, %v822
      %824 = vdwg.mxu0
      %827 = vrot.lane.b32.xlu0 %v778, 120
      %v828 = vpop.permute.xlu0 %827
      %829 = vrot.lane.b32.xlu0 %v779, 120
      %v830 = vpop.permute.xlu0 %829
      %831 = vrot.lane.b32.xlu0 %v778, 88
      %v832 = vpop.permute.xlu0 %831
      %833 = vrot.lane.b32.xlu0 %v779, 88
      %v834 = vpop.permute.xlu0 %833
      %v835 = vsel %vm314, %v828, 0
      %v837 = vsel %vm314, %v830, 0
      %v839 = vsel %vm314, %v832, 0
      %v841 = vsel %vm314, %v834, 0
      %843 = vmatpush.xpose.msra.mxu0 0.0
      %844 = vmatpush.xpose.msra.mxu0 0.0
      %845 = vmatpush.xpose.msra.mxu0 0.0
      %846 = vmatpush.xpose.msra.mxu0 0.0
      %847 = vmatpush.xpose.msra.mxu0 0.0
      %848 = vmatpush.xpose.msra.mxu0 0.0
      %849 = vmatpush.xpose.msra.mxu0 0.0
      %850 = vmatpush.xpose.msra.mxu0 0.0
      %851 = vmatpush.xpose.msra.mxu0 0.0
      %852 = vmatpush.xpose.msra.mxu0 0.0
      %853 = vmatpush.xpose.msra.mxu0 0.0
      %854 = vmatpush.xpose.msra.mxu0 0.0
      %855 = vmatpush.xpose.msra.mxu0 0.0
      %856 = vmatpush.xpose.msra.mxu0 0.0
      %857 = vmatpush.xpose.msra.mxu0 %v841
      %858 = vmatpush.xpose.msra.mxu0 %v839
      %859 = vmatmul.f32.gmra.mxu0 %v835
      %v860 = vpop.f32.mrf.mxu0
      %v861 = vadd.f32 0.0, %v860
      %862 = vmatmul.f32.gmra.mxu0 %v837
      %v863 = vpop.f32.mrf.mxu0
      %v864 = vadd.f32 0.0, %v863
      %865 = vdwg.mxu0
      %868 = vrot.lane.b32.xlu0 %v780, 120
      %v869 = vpop.permute.xlu0 %868
      %870 = vrot.lane.b32.xlu0 %v781, 120
      %v871 = vpop.permute.xlu0 %870
      %872 = vrot.lane.b32.xlu0 %v780, 88
      %v873 = vpop.permute.xlu0 %872
      %874 = vrot.lane.b32.xlu0 %v781, 88
      %v875 = vpop.permute.xlu0 %874
      %v876 = vsel %vm314, %v869, 0
      %v878 = vsel %vm314, %v871, 0
      %v880 = vsel %vm314, %v873, 0
      %v882 = vsel %vm314, %v875, 0
      %884 = vmatpush.xpose.msra.mxu0 0.0
      %885 = vmatpush.xpose.msra.mxu0 0.0
      %886 = vmatpush.xpose.msra.mxu0 0.0
      %887 = vmatpush.xpose.msra.mxu0 0.0
      %888 = vmatpush.xpose.msra.mxu0 0.0
      %889 = vmatpush.xpose.msra.mxu0 0.0
      %890 = vmatpush.xpose.msra.mxu0 0.0
      %891 = vmatpush.xpose.msra.mxu0 0.0
      %892 = vmatpush.xpose.msra.mxu0 0.0
      %893 = vmatpush.xpose.msra.mxu0 0.0
      %894 = vmatpush.xpose.msra.mxu0 0.0
      %895 = vmatpush.xpose.msra.mxu0 0.0
      %896 = vmatpush.xpose.msra.mxu0 0.0
      %897 = vmatpush.xpose.msra.mxu0 0.0
      %898 = vmatpush.xpose.msra.mxu0 %v882
      %899 = vmatpush.xpose.msra.mxu0 %v880
      %900 = vmatmul.f32.gmra.mxu0 %v876
      %v901 = vpop.f32.mrf.mxu0
      %v902 = vadd.f32 0.0, %v901
      %903 = vmatmul.f32.gmra.mxu0 %v878
      %v904 = vpop.f32.mrf.mxu0
      %v905 = vadd.f32 0.0, %v904
      %906 = vdwg.mxu0
      %909 = vrot.lane.b32.xlu0 %v782, 120
      %v910 = vpop.permute.xlu0 %909
      %911 = vrot.lane.b32.xlu0 %v783, 120
      %v912 = vpop.permute.xlu0 %911
      %913 = vrot.lane.b32.xlu0 %v782, 88
      %v914 = vpop.permute.xlu0 %913
      %915 = vrot.lane.b32.xlu0 %v783, 88
      %v916 = vpop.permute.xlu0 %915
      %v917 = vsel %vm314, %v910, 0
      %v919 = vsel %vm314, %v912, 0
      %v921 = vsel %vm314, %v914, 0
      %v923 = vsel %vm314, %v916, 0
      %925 = vmatpush.xpose.msra.mxu0 0.0
      %926 = vmatpush.xpose.msra.mxu0 0.0
      %927 = vmatpush.xpose.msra.mxu0 0.0
      %928 = vmatpush.xpose.msra.mxu0 0.0
      %929 = vmatpush.xpose.msra.mxu0 0.0
      %930 = vmatpush.xpose.msra.mxu0 0.0
      %931 = vmatpush.xpose.msra.mxu0 0.0
      %932 = vmatpush.xpose.msra.mxu0 0.0
      %933 = vmatpush.xpose.msra.mxu0 0.0
      %934 = vmatpush.xpose.msra.mxu0 0.0
      %935 = vmatpush.xpose.msra.mxu0 0.0
      %936 = vmatpush.xpose.msra.mxu0 0.0
      %937 = vmatpush.xpose.msra.mxu0 0.0
      %938 = vmatpush.xpose.msra.mxu0 0.0
      %939 = vmatpush.xpose.msra.mxu0 %v923
      %940 = vmatpush.xpose.msra.mxu0 %v921
      %941 = vmatmul.f32.gmra.mxu0 %v917
      %v942 = vpop.f32.mrf.mxu0
      %v943 = vadd.f32 0.0, %v942
      %944 = vmatmul.f32.gmra.mxu0 %v919
      %v945 = vpop.f32.mrf.mxu0
      %v946 = vadd.f32 0.0, %v945
      %947 = vdwg.mxu0
      %v948 = vsel %vm457, %v820, -inf
      %949 = vmax.xlane.f32.xlu0 %v948
      %v950 = vpop.xlane.xlu0 %949
      %v951 = vsel %vm457, %v823, -inf
      %952 = vmax.xlane.f32.xlu0 %v951
      %v953 = vpop.xlane.xlu0 %952
      %v954 = vsel %vm457, %v861, -inf
      %955 = vmax.xlane.f32.xlu0 %v954
      %v956 = vpop.xlane.xlu0 %955
      %v957 = vsel %vm457, %v864, -inf
      %958 = vmax.xlane.f32.xlu0 %v957
      %v959 = vpop.xlane.xlu0 %958
      %v960 = vsel %vm457, %v902, -inf
      %961 = vmax.xlane.f32.xlu0 %v960
      %v962 = vpop.xlane.xlu0 %961
      %v963 = vsel %vm457, %v905, -inf
      %964 = vmax.xlane.f32.xlu0 %v963
      %v965 = vpop.xlane.xlu0 %964
      %v966 = vsel %vm457, %v943, -inf
      %967 = vmax.xlane.f32.xlu0 %v966
      %v968 = vpop.xlane.xlu0 %967
      %v969 = vsel %vm457, %v946, -inf
      %970 = vmax.xlane.f32.xlu0 %v969
      %v971 = vpop.xlane.xlu0 %970
      %v972 = vsub.f32 %v820, %v950
      %v973 = vsub.f32 %v823, %v953
      %v974 = vsub.f32 %v861, %v956
      %v975 = vsub.f32 %v864, %v959
      %v976 = vsub.f32 %v902, %v962
      %v977 = vsub.f32 %v905, %v965
      %v978 = vsub.f32 %v943, %v968
      %v979 = vsub.f32 %v946, %v971
      %v980 = vmul.f32 %v972, 1.442695
      %v981 = vpow.pop %v980
      %v982 = vmul.f32 %v973, 1.442695
      %v983 = vpow.pop %v982
      %v984 = vmul.f32 %v974, 1.442695
      %v985 = vpow.pop %v984
      %v986 = vmul.f32 %v975, 1.442695
      %v987 = vpow.pop %v986
      %v988 = vmul.f32 %v976, 1.442695
      %v989 = vpow.pop %v988
      %v990 = vmul.f32 %v977, 1.442695
      %v991 = vpow.pop %v990
      %v992 = vmul.f32 %v978, 1.442695
      %v993 = vpow.pop %v992
      %v994 = vmul.f32 %v979, 1.442695
      %v995 = vpow.pop %v994
      %v996 = vsel %vm457, %v981, 0.0
      %997 = vadd.xlane.f32.xlu0 %v996
      %v998 = vpop.xlane.xlu0 %997
      %v999 = vsel %vm457, %v983, 0.0
      %1000 = vadd.xlane.f32.xlu0 %v999
      %v1001 = vpop.xlane.xlu0 %1000
      %v1002 = vsel %vm457, %v985, 0.0
      %1003 = vadd.xlane.f32.xlu0 %v1002
      %v1004 = vpop.xlane.xlu0 %1003
      %v1005 = vsel %vm457, %v987, 0.0
      %1006 = vadd.xlane.f32.xlu0 %v1005
      %v1007 = vpop.xlane.xlu0 %1006
      %v1008 = vsel %vm457, %v989, 0.0
      %1009 = vadd.xlane.f32.xlu0 %v1008
      %v1010 = vpop.xlane.xlu0 %1009
      %v1011 = vsel %vm457, %v991, 0.0
      %1012 = vadd.xlane.f32.xlu0 %v1011
      %v1013 = vpop.xlane.xlu0 %1012
      %v1014 = vsel %vm457, %v993, 0.0
      %1015 = vadd.xlane.f32.xlu0 %v1014
      %v1016 = vpop.xlane.xlu0 %1015
      %v1017 = vsel %vm457, %v995, 0.0
      %1018 = vadd.xlane.f32.xlu0 %v1017
      %v1019 = vpop.xlane.xlu0 %1018
      %1020 = vrot.lane.b32.xlu0 %v776, 56
      %v1021 = vpop.permute.xlu0 %1020
      %1022 = vrot.lane.b32.xlu0 %v777, 56
      %v1023 = vpop.permute.xlu0 %1022
      %v1027 = vsel %vm457, %v981, 0
      %v1030 = vsel %vm457, %v983, 0
      %1032 = vmatpush.msra.mxu0 0.0
      %1033 = vmatpush.msra.mxu0 0.0
      %1034 = vmatpush.msra.mxu0 0.0
      %1035 = vmatpush.msra.mxu0 0.0
      %1036 = vmatpush.msra.mxu0 0.0
      %1037 = vmatpush.msra.mxu0 0.0
      %1038 = vmatpush.msra.mxu0 0.0
      %1039 = vmatpush.msra.mxu0 0.0
      %1040 = vmatpush.msra.mxu0 0.0
      %1041 = vmatpush.msra.mxu0 0.0
      %1042 = vmatpush.msra.mxu0 0.0
      %1043 = vmatpush.msra.mxu0 0.0
      %1044 = vmatpush.msra.mxu0 0.0
      %1045 = vmatpush.msra.mxu0 0.0
      %1046 = vmatpush.msra.mxu0 %v1023
      %1047 = vmatpush.msra.mxu0 %v1021
      %1048 = vmatmul.f32.gmra.mxu0 %v1027
      %v1049 = vpop.f32.mrf.mxu0
      %v1050 = vadd.f32 0.0, %v1049
      %1051 = vmatmul.f32.gmra.mxu0 %v1030
      %v1052 = vpop.f32.mrf.mxu0
      %v1053 = vadd.f32 0.0, %v1052
      %1054 = vdwg.mxu0
      %1055 = vrot.lane.b32.xlu0 %v778, 56
      %v1056 = vpop.permute.xlu0 %1055
      %1057 = vrot.lane.b32.xlu0 %v779, 56
      %v1058 = vpop.permute.xlu0 %1057
      %v1062 = vsel %vm457, %v985, 0
      %v1065 = vsel %vm457, %v987, 0
      %1067 = vmatpush.msra.mxu0 0.0
      %1068 = vmatpush.msra.mxu0 0.0
      %1069 = vmatpush.msra.mxu0 0.0
      %1070 = vmatpush.msra.mxu0 0.0
      %1071 = vmatpush.msra.mxu0 0.0
      %1072 = vmatpush.msra.mxu0 0.0
      %1073 = vmatpush.msra.mxu0 0.0
      %1074 = vmatpush.msra.mxu0 0.0
      %1075 = vmatpush.msra.mxu0 0.0
      %1076 = vmatpush.msra.mxu0 0.0
      %1077 = vmatpush.msra.mxu0 0.0
      %1078 = vmatpush.msra.mxu0 0.0
      %1079 = vmatpush.msra.mxu0 0.0
      %1080 = vmatpush.msra.mxu0 0.0
      %1081 = vmatpush.msra.mxu0 %v1058
      %1082 = vmatpush.msra.mxu0 %v1056
      %1083 = vmatmul.f32.gmra.mxu0 %v1062
      %v1084 = vpop.f32.mrf.mxu0
      %v1085 = vadd.f32 0.0, %v1084
      %1086 = vmatmul.f32.gmra.mxu0 %v1065
      %v1087 = vpop.f32.mrf.mxu0
      %v1088 = vadd.f32 0.0, %v1087
      %1089 = vdwg.mxu0
      %1090 = vrot.lane.b32.xlu0 %v780, 56
      %v1091 = vpop.permute.xlu0 %1090
      %1092 = vrot.lane.b32.xlu0 %v781, 56
      %v1093 = vpop.permute.xlu0 %1092
      %v1097 = vsel %vm457, %v989, 0
      %v1100 = vsel %vm457, %v991, 0
      %1102 = vmatpush.msra.mxu0 0.0
      %1103 = vmatpush.msra.mxu0 0.0
      %1104 = vmatpush.msra.mxu0 0.0
      %1105 = vmatpush.msra.mxu0 0.0
      %1106 = vmatpush.msra.mxu0 0.0
      %1107 = vmatpush.msra.mxu0 0.0
      %1108 = vmatpush.msra.mxu0 0.0
      %1109 = vmatpush.msra.mxu0 0.0
      %1110 = vmatpush.msra.mxu0 0.0
      %1111 = vmatpush.msra.mxu0 0.0
      %1112 = vmatpush.msra.mxu0 0.0
      %1113 = vmatpush.msra.mxu0 0.0
      %1114 = vmatpush.msra.mxu0 0.0
      %1115 = vmatpush.msra.mxu0 0.0
      %1116 = vmatpush.msra.mxu0 %v1093
      %1117 = vmatpush.msra.mxu0 %v1091
      %1118 = vmatmul.f32.gmra.mxu0 %v1097
      %v1119 = vpop.f32.mrf.mxu0
      %v1120 = vadd.f32 0.0, %v1119
      %1121 = vmatmul.f32.gmra.mxu0 %v1100
      %v1122 = vpop.f32.mrf.mxu0
      %v1123 = vadd.f32 0.0, %v1122
      %1124 = vdwg.mxu0
      %1125 = vrot.lane.b32.xlu0 %v782, 56
      %v1126 = vpop.permute.xlu0 %1125
      %1127 = vrot.lane.b32.xlu0 %v783, 56
      %v1128 = vpop.permute.xlu0 %1127
      %v1132 = vsel %vm457, %v993, 0
      %v1135 = vsel %vm457, %v995, 0
      %1137 = vmatpush.msra.mxu0 0.0
      %1138 = vmatpush.msra.mxu0 0.0
      %1139 = vmatpush.msra.mxu0 0.0
      %1140 = vmatpush.msra.mxu0 0.0
      %1141 = vmatpush.msra.mxu0 0.0
      %1142 = vmatpush.msra.mxu0 0.0
      %1143 = vmatpush.msra.mxu0 0.0
      %1144 = vmatpush.msra.mxu0 0.0
      %1145 = vmatpush.msra.mxu0 0.0
      %1146 = vmatpush.msra.mxu0 0.0
      %1147 = vmatpush.msra.mxu0 0.0
      %1148 = vmatpush.msra.mxu0 0.0
      %1149 = vmatpush.msra.mxu0 0.0
      %1150 = vmatpush.msra.mxu0 0.0
      %1151 = vmatpush.msra.mxu0 %v1128
      %1152 = vmatpush.msra.mxu0 %v1126
      %1153 = vmatmul.f32.gmra.mxu0 %v1132
      %v1154 = vpop.f32.mrf.mxu0
      %v1155 = vadd.f32 0.0, %v1154
      %1156 = vmatmul.f32.gmra.mxu0 %v1135
      %v1157 = vpop.f32.mrf.mxu0
      %v1158 = vadd.f32 0.0, %v1157
      %1159 = vdwg.mxu0
      %v1160 = vrcp.pop %v998
      %v1161 = vrcp.pop %v1001
      %v1162 = vrcp.pop %v1004
      %v1163 = vrcp.pop %v1007
      %v1164 = vrcp.pop %v1010
      %v1165 = vrcp.pop %v1013
      %v1166 = vrcp.pop %v1016
      %v1167 = vrcp.pop %v1019
      %v1168 = vmul.f32 %v1050, %v1160
      %v1169 = vmul.f32 %v1053, %v1161
      %v1170 = vmul.f32 %v1085, %v1162
      %v1171 = vmul.f32 %v1088, %v1163
      %v1172 = vmul.f32 %v1120, %v1164
      %v1173 = vmul.f32 %v1123, %v1165
      %v1174 = vmul.f32 %v1155, %v1166
      %v1175 = vmul.f32 %v1158, %v1167
      %v1176 = vld [vmem:[#allocation3] sm:$0xff]
      %v1177 = vld [vmem:[#allocation3 + $0x8] sm:$0xff]
      %v1178 = vld [vmem:[#allocation3 + $0x10] sm:$0xff]
      %v1179 = vld [vmem:[#allocation3 + $0x18] sm:$0xff]
      %v1180 = vld [vmem:[#allocation3 + $0x20] sm:$0xff]
      %v1181 = vld [vmem:[#allocation3 + $0x28] sm:$0xff]
      %v1182 = vld [vmem:[#allocation3 + $0x30] sm:$0xff]
      %v1183 = vld [vmem:[#allocation3 + $0x38] sm:$0xff]
      %v1184 = vld [vmem:[%s2 + $0x8] sm:$0xff]
      %v1186 = vsel %vm314, %v1168, 0
      %v1189 = vsel %vm314, %v1169, 0
      %v1192 = vsel %vm314, %v1170, 0
      %v1195 = vsel %vm314, %v1171, 0
      %v1198 = vsel %vm314, %v1172, 0
      %v1201 = vsel %vm314, %v1173, 0
      %v1204 = vsel %vm314, %v1174, 0
      %v1207 = vsel %vm314, %v1175, 0
      %1209 = vmatpush.msra.mxu0 0.0
      %1210 = vmatpush.msra.mxu0 0.0
      %1211 = vmatpush.msra.mxu0 0.0
      %1212 = vmatpush.msra.mxu0 0.0
      %1213 = vmatpush.msra.mxu0 0.0
      %1214 = vmatpush.msra.mxu0 0.0
      %1215 = vmatpush.msra.mxu0 0.0
      %1216 = vmatpush.msra.mxu0 0.0
      %1217 = vmatpush.msra.mxu0 0.0
      %1218 = vmatpush.msra.mxu0 0.0
      %1219 = vmatpush.msra.mxu0 0.0
      %1220 = vmatpush.msra.mxu0 0.0
      %1221 = vmatpush.msra.mxu0 0.0
      %1222 = vmatpush.msra.mxu0 0.0
      %1223 = vmatpush.msra.mxu0 0.0
      %1224 = vmatpush.msra.mxu0 %v1184
      %1225 = vmatmul.f32.gmra.mxu0 %v1186
      %v1226 = vpop.f32.mrf.mxu0
      %v1227 = vadd.f32 0.0, %v1226
      %1228 = vmatmul.f32.gmra.mxu0 %v1189
      %v1229 = vpop.f32.mrf.mxu0
      %v1230 = vadd.f32 0.0, %v1229
      %1231 = vmatmul.f32.gmra.mxu0 %v1192
      %v1232 = vpop.f32.mrf.mxu0
      %v1233 = vadd.f32 0.0, %v1232
      %1234 = vmatmul.f32.gmra.mxu0 %v1195
      %v1235 = vpop.f32.mrf.mxu0
      %v1236 = vadd.f32 0.0, %v1235
      %1237 = vmatmul.f32.gmra.mxu0 %v1198
      %v1238 = vpop.f32.mrf.mxu0
      %v1239 = vadd.f32 0.0, %v1238
      %1240 = vmatmul.f32.gmra.mxu0 %v1201
      %v1241 = vpop.f32.mrf.mxu0
      %v1242 = vadd.f32 0.0, %v1241
      %1243 = vmatmul.f32.gmra.mxu0 %v1204
      %v1244 = vpop.f32.mrf.mxu0
      %v1245 = vadd.f32 0.0, %v1244
      %1246 = vmatmul.f32.gmra.mxu0 %v1207
      %v1247 = vpop.f32.mrf.mxu0
      %v1248 = vadd.f32 0.0, %v1247
      %1249 = vdwg.mxu0
      %v1250 = vadd.f32 %v1176, %v1227
      %v1251 = vadd.f32 %v1177, %v1230
      %v1252 = vadd.f32 %v1178, %v1233
      %v1253 = vadd.f32 %v1179, %v1236
      %v1254 = vadd.f32 %v1180, %v1239
      %v1255 = vadd.f32 %v1181, %v1242
      %v1256 = vadd.f32 %v1182, %v1245
      %v1257 = vadd.f32 %v1183, %v1248
      %1258 = vst.msk [vmem:[#allocation3] sm:$0xff] %vm213, %v1250
      %1259 = vst.msk [vmem:[#allocation3 + $0x8] sm:$0xff] %vm213, %v1251
      %1260 = vst.msk [vmem:[#allocation3 + $0x10] sm:$0xff] %vm213, %v1252
      %1261 = vst.msk [vmem:[#allocation3 + $0x18] sm:$0xff] %vm213, %v1253
      %1262 = vst.msk [vmem:[#allocation3 + $0x20] sm:$0xff] %vm213, %v1254
      %1263 = vst.msk [vmem:[#allocation3 + $0x28] sm:$0xff] %vm213, %v1255
      %1264 = vst.msk [vmem:[#allocation3 + $0x30] sm:$0xff] %vm213, %v1256
      %1265 = vst.msk [vmem:[#allocation3 + $0x38] sm:$0xff] %vm213, %v1257
      %v1266 = vld [vmem:[#allocation2] sm:$0xff]
      %v1267 = vld [vmem:[#allocation2 + $0x8] sm:$0xff]
      %v1268 = vld [vmem:[#allocation2 + $0x10] sm:$0xff]
      %v1269 = vld [vmem:[#allocation2 + $0x18] sm:$0xff]
      %v1270 = vld [vmem:[#allocation2 + $0x20] sm:$0xff]
      %v1271 = vld [vmem:[#allocation2 + $0x28] sm:$0xff]
      %v1272 = vld [vmem:[#allocation2 + $0x30] sm:$0xff]
      %v1273 = vld [vmem:[#allocation2 + $0x38] sm:$0xff]
      %1276 = vrot.lane.b32.xlu0 %v1266, 112
      %v1277 = vpop.permute.xlu0 %1276
      %1278 = vrot.lane.b32.xlu0 %v1267, 112
      %v1279 = vpop.permute.xlu0 %1278
      %1280 = vrot.lane.b32.xlu0 %v1266, 80
      %v1281 = vpop.permute.xlu0 %1280
      %1282 = vrot.lane.b32.xlu0 %v1267, 80
      %v1283 = vpop.permute.xlu0 %1282
      %v1284 = vsel %vm314, %v1277, 0
      %v1286 = vsel %vm314, %v1279, 0
      %v1288 = vsel %vm314, %v1281, 0
      %v1290 = vsel %vm314, %v1283, 0
      %1292 = vmatpush.xpose.msra.mxu0 0.0
      %1293 = vmatpush.xpose.msra.mxu0 0.0
      %1294 = vmatpush.xpose.msra.mxu0 0.0
      %1295 = vmatpush.xpose.msra.mxu0 0.0
      %1296 = vmatpush.xpose.msra.mxu0 0.0
      %1297 = vmatpush.xpose.msra.mxu0 0.0
      %1298 = vmatpush.xpose.msra.mxu0 0.0
      %1299 = vmatpush.xpose.msra.mxu0 0.0
      %1300 = vmatpush.xpose.msra.mxu0 0.0
      %1301 = vmatpush.xpose.msra.mxu0 0.0
      %1302 = vmatpush.xpose.msra.mxu0 0.0
      %1303 = vmatpush.xpose.msra.mxu0 0.0
      %1304 = vmatpush.xpose.msra.mxu0 0.0
      %1305 = vmatpush.xpose.msra.mxu0 0.0
      %1306 = vmatpush.xpose.msra.mxu0 %v1290
      %1307 = vmatpush.xpose.msra.mxu0 %v1288
      %1308 = vmatmul.f32.gmra.mxu0 %v1284
      %v1309 = vpop.f32.mrf.mxu0
      %v1310 = vadd.f32 0.0, %v1309
      %1311 = vmatmul.f32.gmra.mxu0 %v1286
      %v1312 = vpop.f32.mrf.mxu0
      %v1313 = vadd.f32 0.0, %v1312
      %1314 = vdwg.mxu0
      %1317 = vrot.lane.b32.xlu0 %v1268, 112
      %v1318 = vpop.permute.xlu0 %1317
      %1319 = vrot.lane.b32.xlu0 %v1269, 112
      %v1320 = vpop.permute.xlu0 %1319
      %1321 = vrot.lane.b32.xlu0 %v1268, 80
      %v1322 = vpop.permute.xlu0 %1321
      %1323 = vrot.lane.b32.xlu0 %v1269, 80
      %v1324 = vpop.permute.xlu0 %1323
      %v1325 = vsel %vm314, %v1318, 0
      %v1327 = vsel %vm314, %v1320, 0
      %v1329 = vsel %vm314, %v1322, 0
      %v1331 = vsel %vm314, %v1324, 0
      %1333 = vmatpush.xpose.msra.mxu0 0.0
      %1334 = vmatpush.xpose.msra.mxu0 0.0
      %1335 = vmatpush.xpose.msra.mxu0 0.0
      %1336 = vmatpush.xpose.msra.mxu0 0.0
      %1337 = vmatpush.xpose.msra.mxu0 0.0
      %1338 = vmatpush.xpose.msra.mxu0 0.0
      %1339 = vmatpush.xpose.msra.mxu0 0.0
      %1340 = vmatpush.xpose.msra.mxu0 0.0
      %1341 = vmatpush.xpose.msra.mxu0 0.0
      %1342 = vmatpush.xpose.msra.mxu0 0.0
      %1343 = vmatpush.xpose.msra.mxu0 0.0
      %1344 = vmatpush.xpose.msra.mxu0 0.0
      %1345 = vmatpush.xpose.msra.mxu0 0.0
      %1346 = vmatpush.xpose.msra.mxu0 0.0
      %1347 = vmatpush.xpose.msra.mxu0 %v1331
      %1348 = vmatpush.xpose.msra.mxu0 %v1329
      %1349 = vmatmul.f32.gmra.mxu0 %v1325
      %v1350 = vpop.f32.mrf.mxu0
      %v1351 = vadd.f32 0.0, %v1350
      %1352 = vmatmul.f32.gmra.mxu0 %v1327
      %v1353 = vpop.f32.mrf.mxu0
      %v1354 = vadd.f32 0.0, %v1353
      %1355 = vdwg.mxu0
      %1358 = vrot.lane.b32.xlu0 %v1270, 112
      %v1359 = vpop.permute.xlu0 %1358
      %1360 = vrot.lane.b32.xlu0 %v1271, 112
      %v1361 = vpop.permute.xlu0 %1360
      %1362 = vrot.lane.b32.xlu0 %v1270, 80
      %v1363 = vpop.permute.xlu0 %1362
      %1364 = vrot.lane.b32.xlu0 %v1271, 80
      %v1365 = vpop.permute.xlu0 %1364
      %v1366 = vsel %vm314, %v1359, 0
      %v1368 = vsel %vm314, %v1361, 0
      %v1370 = vsel %vm314, %v1363, 0
      %v1372 = vsel %vm314, %v1365, 0
      %1374 = vmatpush.xpose.msra.mxu0 0.0
      %1375 = vmatpush.xpose.msra.mxu0 0.0
      %1376 = vmatpush.xpose.msra.mxu0 0.0
      %1377 = vmatpush.xpose.msra.mxu0 0.0
      %1378 = vmatpush.xpose.msra.mxu0 0.0
      %1379 = vmatpush.xpose.msra.mxu0 0.0
      %1380 = vmatpush.xpose.msra.mxu0 0.0
      %1381 = vmatpush.xpose.msra.mxu0 0.0
      %1382 = vmatpush.xpose.msra.mxu0 0.0
      %1383 = vmatpush.xpose.msra.mxu0 0.0
      %1384 = vmatpush.xpose.msra.mxu0 0.0
      %1385 = vmatpush.xpose.msra.mxu0 0.0
      %1386 = vmatpush.xpose.msra.mxu0 0.0
      %1387 = vmatpush.xpose.msra.mxu0 0.0
      %1388 = vmatpush.xpose.msra.mxu0 %v1372
      %1389 = vmatpush.xpose.msra.mxu0 %v1370
      %1390 = vmatmul.f32.gmra.mxu0 %v1366
      %v1391 = vpop.f32.mrf.mxu0
      %v1392 = vadd.f32 0.0, %v1391
      %1393 = vmatmul.f32.gmra.mxu0 %v1368
      %v1394 = vpop.f32.mrf.mxu0
      %v1395 = vadd.f32 0.0, %v1394
      %1396 = vdwg.mxu0
      %1399 = vrot.lane.b32.xlu0 %v1272, 112
      %v1400 = vpop.permute.xlu0 %1399
      %1401 = vrot.lane.b32.xlu0 %v1273, 112
      %v1402 = vpop.permute.xlu0 %1401
      %1403 = vrot.lane.b32.xlu0 %v1272, 80
      %v1404 = vpop.permute.xlu0 %1403
      %1405 = vrot.lane.b32.xlu0 %v1273, 80
      %v1406 = vpop.permute.xlu0 %1405
      %v1407 = vsel %vm314, %v1400, 0
      %v1409 = vsel %vm314, %v1402, 0
      %v1411 = vsel %vm314, %v1404, 0
      %v1413 = vsel %vm314, %v1406, 0
      %1415 = vmatpush.xpose.msra.mxu0 0.0
      %1416 = vmatpush.xpose.msra.mxu0 0.0
      %1417 = vmatpush.xpose.msra.mxu0 0.0
      %1418 = vmatpush.xpose.msra.mxu0 0.0
      %1419 = vmatpush.xpose.msra.mxu0 0.0
      %1420 = vmatpush.xpose.msra.mxu0 0.0
      %1421 = vmatpush.xpose.msra.mxu0 0.0
      %1422 = vmatpush.xpose.msra.mxu0 0.0
      %1423 = vmatpush.xpose.msra.mxu0 0.0
      %1424 = vmatpush.xpose.msra.mxu0 0.0
      %1425 = vmatpush.xpose.msra.mxu0 0.0
      %1426 = vmatpush.xpose.msra.mxu0 0.0
      %1427 = vmatpush.xpose.msra.mxu0 0.0
      %1428 = vmatpush.xpose.msra.mxu0 0.0
      %1429 = vmatpush.xpose.msra.mxu0 %v1413
      %1430 = vmatpush.xpose.msra.mxu0 %v1411
      %1431 = vmatmul.f32.gmra.mxu0 %v1407
      %v1432 = vpop.f32.mrf.mxu0
      %v1433 = vadd.f32 0.0, %v1432
      %1434 = vmatmul.f32.gmra.mxu0 %v1409
      %v1435 = vpop.f32.mrf.mxu0
      %v1436 = vadd.f32 0.0, %v1435
      %1437 = vdwg.mxu0
      %v1438 = vsel %vm457, %v1310, -inf
      %1439 = vmax.xlane.f32.xlu0 %v1438
      %v1440 = vpop.xlane.xlu0 %1439
      %v1441 = vsel %vm457, %v1313, -inf
      %1442 = vmax.xlane.f32.xlu0 %v1441
      %v1443 = vpop.xlane.xlu0 %1442
      %v1444 = vsel %vm457, %v1351, -inf
      %1445 = vmax.xlane.f32.xlu0 %v1444
      %v1446 = vpop.xlane.xlu0 %1445
      %v1447 = vsel %vm457, %v1354, -inf
      %1448 = vmax.xlane.f32.xlu0 %v1447
      %v1449 = vpop.xlane.xlu0 %1448
      %v1450 = vsel %vm457, %v1392, -inf
      %1451 = vmax.xlane.f32.xlu0 %v1450
      %v1452 = vpop.xlane.xlu0 %1451
      %v1453 = vsel %vm457, %v1395, -inf
      %1454 = vmax.xlane.f32.xlu0 %v1453
      %v1455 = vpop.xlane.xlu0 %1454
      %v1456 = vsel %vm457, %v1433, -inf
      %1457 = vmax.xlane.f32.xlu0 %v1456
      %v1458 = vpop.xlane.xlu0 %1457
      %v1459 = vsel %vm457, %v1436, -inf
      %1460 = vmax.xlane.f32.xlu0 %v1459
      %v1461 = vpop.xlane.xlu0 %1460
      %v1462 = vsub.f32 %v1310, %v1440
      %v1463 = vsub.f32 %v1313, %v1443
      %v1464 = vsub.f32 %v1351, %v1446
      %v1465 = vsub.f32 %v1354, %v1449
      %v1466 = vsub.f32 %v1392, %v1452
      %v1467 = vsub.f32 %v1395, %v1455
      %v1468 = vsub.f32 %v1433, %v1458
      %v1469 = vsub.f32 %v1436, %v1461
      %v1470 = vmul.f32 %v1462, 1.442695
      %v1471 = vpow.pop %v1470
      %v1472 = vmul.f32 %v1463, 1.442695
      %v1473 = vpow.pop %v1472
      %v1474 = vmul.f32 %v1464, 1.442695
      %v1475 = vpow.pop %v1474
      %v1476 = vmul.f32 %v1465, 1.442695
      %v1477 = vpow.pop %v1476
      %v1478 = vmul.f32 %v1466, 1.442695
      %v1479 = vpow.pop %v1478
      %v1480 = vmul.f32 %v1467, 1.442695
      %v1481 = vpow.pop %v1480
      %v1482 = vmul.f32 %v1468, 1.442695
      %v1483 = vpow.pop %v1482
      %v1484 = vmul.f32 %v1469, 1.442695
      %v1485 = vpow.pop %v1484
      %v1486 = vsel %vm457, %v1471, 0.0
      %1487 = vadd.xlane.f32.xlu0 %v1486
      %v1488 = vpop.xlane.xlu0 %1487
      %v1489 = vsel %vm457, %v1473, 0.0
      %1490 = vadd.xlane.f32.xlu0 %v1489
      %v1491 = vpop.xlane.xlu0 %1490
      %v1492 = vsel %vm457, %v1475, 0.0
      %1493 = vadd.xlane.f32.xlu0 %v1492
      %v1494 = vpop.xlane.xlu0 %1493
      %v1495 = vsel %vm457, %v1477, 0.0
      %1496 = vadd.xlane.f32.xlu0 %v1495
      %v1497 = vpop.xlane.xlu0 %1496
      %v1498 = vsel %vm457, %v1479, 0.0
      %1499 = vadd.xlane.f32.xlu0 %v1498
      %v1500 = vpop.xlane.xlu0 %1499
      %v1501 = vsel %vm457, %v1481, 0.0
      %1502 = vadd.xlane.f32.xlu0 %v1501
      %v1503 = vpop.xlane.xlu0 %1502
      %v1504 = vsel %vm457, %v1483, 0.0
      %1505 = vadd.xlane.f32.xlu0 %v1504
      %v1506 = vpop.xlane.xlu0 %1505
      %v1507 = vsel %vm457, %v1485, 0.0
      %1508 = vadd.xlane.f32.xlu0 %v1507
      %v1509 = vpop.xlane.xlu0 %1508
      %1510 = vrot.lane.b32.xlu0 %v1266, 48
      %v1511 = vpop.permute.xlu0 %1510
      %1512 = vrot.lane.b32.xlu0 %v1267, 48
      %v1513 = vpop.permute.xlu0 %1512
      %v1517 = vsel %vm457, %v1471, 0
      %v1520 = vsel %vm457, %v1473, 0
      %1522 = vmatpush.msra.mxu0 0.0
      %1523 = vmatpush.msra.mxu0 0.0
      %1524 = vmatpush.msra.mxu0 0.0
      %1525 = vmatpush.msra.mxu0 0.0
      %1526 = vmatpush.msra.mxu0 0.0
      %1527 = vmatpush.msra.mxu0 0.0
      %1528 = vmatpush.msra.mxu0 0.0
      %1529 = vmatpush.msra.mxu0 0.0
      %1530 = vmatpush.msra.mxu0 0.0
      %1531 = vmatpush.msra.mxu0 0.0
      %1532 = vmatpush.msra.mxu0 0.0
      %1533 = vmatpush.msra.mxu0 0.0
      %1534 = vmatpush.msra.mxu0 0.0
      %1535 = vmatpush.msra.mxu0 0.0
      %1536 = vmatpush.msra.mxu0 %v1513
      %1537 = vmatpush.msra.mxu0 %v1511
      %1538 = vmatmul.f32.gmra.mxu0 %v1517
      %v1539 = vpop.f32.mrf.mxu0
      %v1540 = vadd.f32 0.0, %v1539
      %1541 = vmatmul.f32.gmra.mxu0 %v1520
      %v1542 = vpop.f32.mrf.mxu0
      %v1543 = vadd.f32 0.0, %v1542
      %1544 = vdwg.mxu0
      %1545 = vrot.lane.b32.xlu0 %v1268, 48
      %v1546 = vpop.permute.xlu0 %1545
      %1547 = vrot.lane.b32.xlu0 %v1269, 48
      %v1548 = vpop.permute.xlu0 %1547
      %v1552 = vsel %vm457, %v1475, 0
      %v1555 = vsel %vm457, %v1477, 0
      %1557 = vmatpush.msra.mxu0 0.0
      %1558 = vmatpush.msra.mxu0 0.0
      %1559 = vmatpush.msra.mxu0 0.0
      %1560 = vmatpush.msra.mxu0 0.0
      %1561 = vmatpush.msra.mxu0 0.0
      %1562 = vmatpush.msra.mxu0 0.0
      %1563 = vmatpush.msra.mxu0 0.0
      %1564 = vmatpush.msra.mxu0 0.0
      %1565 = vmatpush.msra.mxu0 0.0
      %1566 = vmatpush.msra.mxu0 0.0
      %1567 = vmatpush.msra.mxu0 0.0
      %1568 = vmatpush.msra.mxu0 0.0
      %1569 = vmatpush.msra.mxu0 0.0
      %1570 = vmatpush.msra.mxu0 0.0
      %1571 = vmatpush.msra.mxu0 %v1548
      %1572 = vmatpush.msra.mxu0 %v1546
      %1573 = vmatmul.f32.gmra.mxu0 %v1552
      %v1574 = vpop.f32.mrf.mxu0
      %v1575 = vadd.f32 0.0, %v1574
      %1576 = vmatmul.f32.gmra.mxu0 %v1555
      %v1577 = vpop.f32.mrf.mxu0
      %v1578 = vadd.f32 0.0, %v1577
      %1579 = vdwg.mxu0
      %1580 = vrot.lane.b32.xlu0 %v1270, 48
      %v1581 = vpop.permute.xlu0 %1580
      %1582 = vrot.lane.b32.xlu0 %v1271, 48
      %v1583 = vpop.permute.xlu0 %1582
      %v1587 = vsel %vm457, %v1479, 0
      %v1590 = vsel %vm457, %v1481, 0
      %1592 = vmatpush.msra.mxu0 0.0
      %1593 = vmatpush.msra.mxu0 0.0
      %1594 = vmatpush.msra.mxu0 0.0
      %1595 = vmatpush.msra.mxu0 0.0
      %1596 = vmatpush.msra.mxu0 0.0
      %1597 = vmatpush.msra.mxu0 0.0
      %1598 = vmatpush.msra.mxu0 0.0
      %1599 = vmatpush.msra.mxu0 0.0
      %1600 = vmatpush.msra.mxu0 0.0
      %1601 = vmatpush.msra.mxu0 0.0
      %1602 = vmatpush.msra.mxu0 0.0
      %1603 = vmatpush.msra.mxu0 0.0
      %1604 = vmatpush.msra.mxu0 0.0
      %1605 = vmatpush.msra.mxu0 0.0
      %1606 = vmatpush.msra.mxu0 %v1583
      %1607 = vmatpush.msra.mxu0 %v1581
      %1608 = vmatmul.f32.gmra.mxu0 %v1587
      %v1609 = vpop.f32.mrf.mxu0
      %v1610 = vadd.f32 0.0, %v1609
      %1611 = vmatmul.f32.gmra.mxu0 %v1590
      %v1612 = vpop.f32.mrf.mxu0
      %v1613 = vadd.f32 0.0, %v1612
      %1614 = vdwg.mxu0
      %1615 = vrot.lane.b32.xlu0 %v1272, 48
      %v1616 = vpop.permute.xlu0 %1615
      %1617 = vrot.lane.b32.xlu0 %v1273, 48
      %v1618 = vpop.permute.xlu0 %1617
      %v1622 = vsel %vm457, %v1483, 0
      %v1625 = vsel %vm457, %v1485, 0
      %1627 = vmatpush.msra.mxu0 0.0
      %1628 = vmatpush.msra.mxu0 0.0
      %1629 = vmatpush.msra.mxu0 0.0
      %1630 = vmatpush.msra.mxu0 0.0
      %1631 = vmatpush.msra.mxu0 0.0
      %1632 = vmatpush.msra.mxu0 0.0
      %1633 = vmatpush.msra.mxu0 0.0
      %1634 = vmatpush.msra.mxu0 0.0
      %1635 = vmatpush.msra.mxu0 0.0
      %1636 = vmatpush.msra.mxu0 0.0
      %1637 = vmatpush.msra.mxu0 0.0
      %1638 = vmatpush.msra.mxu0 0.0
      %1639 = vmatpush.msra.mxu0 0.0
      %1640 = vmatpush.msra.mxu0 0.0
      %1641 = vmatpush.msra.mxu0 %v1618
      %1642 = vmatpush.msra.mxu0 %v1616
      %1643 = vmatmul.f32.gmra.mxu0 %v1622
      %v1644 = vpop.f32.mrf.mxu0
      %v1645 = vadd.f32 0.0, %v1644
      %1646 = vmatmul.f32.gmra.mxu0 %v1625
      %v1647 = vpop.f32.mrf.mxu0
      %v1648 = vadd.f32 0.0, %v1647
      %1649 = vdwg.mxu0
      %v1650 = vrcp.pop %v1488
      %v1651 = vrcp.pop %v1491
      %v1652 = vrcp.pop %v1494
      %v1653 = vrcp.pop %v1497
      %v1654 = vrcp.pop %v1500
      %v1655 = vrcp.pop %v1503
      %v1656 = vrcp.pop %v1506
      %v1657 = vrcp.pop %v1509
      %v1658 = vmul.f32 %v1540, %v1650
      %v1659 = vmul.f32 %v1543, %v1651
      %v1660 = vmul.f32 %v1575, %v1652
      %v1661 = vmul.f32 %v1578, %v1653
      %v1662 = vmul.f32 %v1610, %v1654
      %v1663 = vmul.f32 %v1613, %v1655
      %v1664 = vmul.f32 %v1645, %v1656
      %v1665 = vmul.f32 %v1648, %v1657
      %v1666 = vld [vmem:[#allocation3] sm:$0xff]
      %v1667 = vld [vmem:[#allocation3 + $0x8] sm:$0xff]
      %v1668 = vld [vmem:[#allocation3 + $0x10] sm:$0xff]
      %v1669 = vld [vmem:[#allocation3 + $0x18] sm:$0xff]
      %v1670 = vld [vmem:[#allocation3 + $0x20] sm:$0xff]
      %v1671 = vld [vmem:[#allocation3 + $0x28] sm:$0xff]
      %v1672 = vld [vmem:[#allocation3 + $0x30] sm:$0xff]
      %v1673 = vld [vmem:[#allocation3 + $0x38] sm:$0xff]
      %v1674 = vld [vmem:[%s2 + $0x10] sm:$0xff]
      %v1676 = vsel %vm314, %v1658, 0
      %v1679 = vsel %vm314, %v1659, 0
      %v1682 = vsel %vm314, %v1660, 0
      %v1685 = vsel %vm314, %v1661, 0
      %v1688 = vsel %vm314, %v1662, 0
      %v1691 = vsel %vm314, %v1663, 0
      %v1694 = vsel %vm314, %v1664, 0
      %v1697 = vsel %vm314, %v1665, 0
      %1699 = vmatpush.msra.mxu0 0.0
      %1700 = vmatpush.msra.mxu0 0.0
      %1701 = vmatpush.msra.mxu0 0.0
      %1702 = vmatpush.msra.mxu0 0.0
      %1703 = vmatpush.msra.mxu0 0.0
      %1704 = vmatpush.msra.mxu0 0.0
      %1705 = vmatpush.msra.mxu0 0.0
      %1706 = vmatpush.msra.mxu0 0.0
      %1707 = vmatpush.msra.mxu0 0.0
      %1708 = vmatpush.msra.mxu0 0.0
      %1709 = vmatpush.msra.mxu0 0.0
      %1710 = vmatpush.msra.mxu0 0.0
      %1711 = vmatpush.msra.mxu0 0.0
      %1712 = vmatpush.msra.mxu0 0.0
      %1713 = vmatpush.msra.mxu0 0.0
      %1714 = vmatpush.msra.mxu0 %v1674
      %1715 = vmatmul.f32.gmra.mxu0 %v1676
      %v1716 = vpop.f32.mrf.mxu0
      %v1717 = vadd.f32 0.0, %v1716
      %1718 = vmatmul.f32.gmra.mxu0 %v1679
      %v1719 = vpop.f32.mrf.mxu0
      %v1720 = vadd.f32 0.0, %v1719
      %1721 = vmatmul.f32.gmra.mxu0 %v1682
      %v1722 = vpop.f32.mrf.mxu0
      %v1723 = vadd.f32 0.0, %v1722
      %1724 = vmatmul.f32.gmra.mxu0 %v1685
      %v1725 = vpop.f32.mrf.mxu0
      %v1726 = vadd.f32 0.0, %v1725
      %1727 = vmatmul.f32.gmra.mxu0 %v1688
      %v1728 = vpop.f32.mrf.mxu0
      %v1729 = vadd.f32 0.0, %v1728
      %1730 = vmatmul.f32.gmra.mxu0 %v1691
      %v1731 = vpop.f32.mrf.mxu0
      %v1732 = vadd.f32 0.0, %v1731
      %1733 = vmatmul.f32.gmra.mxu0 %v1694
      %v1734 = vpop.f32.mrf.mxu0
      %v1735 = vadd.f32 0.0, %v1734
      %1736 = vmatmul.f32.gmra.mxu0 %v1697
      %v1737 = vpop.f32.mrf.mxu0
      %v1738 = vadd.f32 0.0, %v1737
      %1739 = vdwg.mxu0
      %v1740 = vadd.f32 %v1666, %v1717
      %v1741 = vadd.f32 %v1667, %v1720
      %v1742 = vadd.f32 %v1668, %v1723
      %v1743 = vadd.f32 %v1669, %v1726
      %v1744 = vadd.f32 %v1670, %v1729
      %v1745 = vadd.f32 %v1671, %v1732
      %v1746 = vadd.f32 %v1672, %v1735
      %v1747 = vadd.f32 %v1673, %v1738
      %1748 = vst.msk [vmem:[#allocation3] sm:$0xff] %vm213, %v1740
      %1749 = vst.msk [vmem:[#allocation3 + $0x8] sm:$0xff] %vm213, %v1741
      %1750 = vst.msk [vmem:[#allocation3 + $0x10] sm:$0xff] %vm213, %v1742
      %1751 = vst.msk [vmem:[#allocation3 + $0x18] sm:$0xff] %vm213, %v1743
      %1752 = vst.msk [vmem:[#allocation3 + $0x20] sm:$0xff] %vm213, %v1744
      %1753 = vst.msk [vmem:[#allocation3 + $0x28] sm:$0xff] %vm213, %v1745
      %1754 = vst.msk [vmem:[#allocation3 + $0x30] sm:$0xff] %vm213, %v1746
      %1755 = vst.msk [vmem:[#allocation3 + $0x38] sm:$0xff] %vm213, %v1747
      %v1756 = vld [vmem:[#allocation2] sm:$0xff]
      %v1757 = vld [vmem:[#allocation2 + $0x8] sm:$0xff]
      %v1758 = vld [vmem:[#allocation2 + $0x10] sm:$0xff]
      %v1759 = vld [vmem:[#allocation2 + $0x18] sm:$0xff]
      %v1760 = vld [vmem:[#allocation2 + $0x20] sm:$0xff]
      %v1761 = vld [vmem:[#allocation2 + $0x28] sm:$0xff]
      %v1762 = vld [vmem:[#allocation2 + $0x30] sm:$0xff]
      %v1763 = vld [vmem:[#allocation2 + $0x38] sm:$0xff]
      %1766 = vrot.lane.b32.xlu0 %v1756, 104
      %v1767 = vpop.permute.xlu0 %1766
      %1768 = vrot.lane.b32.xlu0 %v1757, 104
      %v1769 = vpop.permute.xlu0 %1768
      %1770 = vrot.lane.b32.xlu0 %v1756, 72
      %v1771 = vpop.permute.xlu0 %1770
      %1772 = vrot.lane.b32.xlu0 %v1757, 72
      %v1773 = vpop.permute.xlu0 %1772
      %v1774 = vsel %vm314, %v1767, 0
      %v1776 = vsel %vm314, %v1769, 0
      %v1778 = vsel %vm314, %v1771, 0
      %v1780 = vsel %vm314, %v1773, 0
      %1782 = vmatpush.xpose.msra.mxu0 0.0
      %1783 = vmatpush.xpose.msra.mxu0 0.0
      %1784 = vmatpush.xpose.msra.mxu0 0.0
      %1785 = vmatpush.xpose.msra.mxu0 0.0
      %1786 = vmatpush.xpose.msra.mxu0 0.0
      %1787 = vmatpush.xpose.msra.mxu0 0.0
      %1788 = vmatpush.xpose.msra.mxu0 0.0
      %1789 = vmatpush.xpose.msra.mxu0 0.0
      %1790 = vmatpush.xpose.msra.mxu0 0.0
      %1791 = vmatpush.xpose.msra.mxu0 0.0
      %1792 = vmatpush.xpose.msra.mxu0 0.0
      %1793 = vmatpush.xpose.msra.mxu0 0.0
      %1794 = vmatpush.xpose.msra.mxu0 0.0
      %1795 = vmatpush.xpose.msra.mxu0 0.0
      %1796 = vmatpush.xpose.msra.mxu0 %v1780
      %1797 = vmatpush.xpose.msra.mxu0 %v1778
      %1798 = vmatmul.f32.gmra.mxu0 %v1774
      %v1799 = vpop.f32.mrf.mxu0
      %v1800 = vadd.f32 0.0, %v1799
      %1801 = vmatmul.f32.gmra.mxu0 %v1776
      %v1802 = vpop.f32.mrf.mxu0
      %v1803 = vadd.f32 0.0, %v1802
      %1804 = vdwg.mxu0
      %1807 = vrot.lane.b32.xlu0 %v1758, 104
      %v1808 = vpop.permute.xlu0 %1807
      %1809 = vrot.lane.b32.xlu0 %v1759, 104
      %v1810 = vpop.permute.xlu0 %1809
      %1811 = vrot.lane.b32.xlu0 %v1758, 72
      %v1812 = vpop.permute.xlu0 %1811
      %1813 = vrot.lane.b32.xlu0 %v1759, 72
      %v1814 = vpop.permute.xlu0 %1813
      %v1815 = vsel %vm314, %v1808, 0
      %v1817 = vsel %vm314, %v1810, 0
      %v1819 = vsel %vm314, %v1812, 0
      %v1821 = vsel %vm314, %v1814, 0
      %1823 = vmatpush.xpose.msra.mxu0 0.0
      %1824 = vmatpush.xpose.msra.mxu0 0.0
      %1825 = vmatpush.xpose.msra.mxu0 0.0
      %1826 = vmatpush.xpose.msra.mxu0 0.0
      %1827 = vmatpush.xpose.msra.mxu0 0.0
      %1828 = vmatpush.xpose.msra.mxu0 0.0
      %1829 = vmatpush.xpose.msra.mxu0 0.0
      %1830 = vmatpush.xpose.msra.mxu0 0.0
      %1831 = vmatpush.xpose.msra.mxu0 0.0
      %1832 = vmatpush.xpose.msra.mxu0 0.0
      %1833 = vmatpush.xpose.msra.mxu0 0.0
      %1834 = vmatpush.xpose.msra.mxu0 0.0
      %1835 = vmatpush.xpose.msra.mxu0 0.0
      %1836 = vmatpush.xpose.msra.mxu0 0.0
      %1837 = vmatpush.xpose.msra.mxu0 %v1821
      %1838 = vmatpush.xpose.msra.mxu0 %v1819
      %1839 = vmatmul.f32.gmra.mxu0 %v1815
      %v1840 = vpop.f32.mrf.mxu0
      %v1841 = vadd.f32 0.0, %v1840
      %1842 = vmatmul.f32.gmra.mxu0 %v1817
      %v1843 = vpop.f32.mrf.mxu0
      %v1844 = vadd.f32 0.0, %v1843
      %1845 = vdwg.mxu0
      %1848 = vrot.lane.b32.xlu0 %v1760, 104
      %v1849 = vpop.permute.xlu0 %1848
      %1850 = vrot.lane.b32.xlu0 %v1761, 104
      %v1851 = vpop.permute.xlu0 %1850
      %1852 = vrot.lane.b32.xlu0 %v1760, 72
      %v1853 = vpop.permute.xlu0 %1852
      %1854 = vrot.lane.b32.xlu0 %v1761, 72
      %v1855 = vpop.permute.xlu0 %1854
      %v1856 = vsel %vm314, %v1849, 0
      %v1858 = vsel %vm314, %v1851, 0
      %v1860 = vsel %vm314, %v1853, 0
      %v1862 = vsel %vm314, %v1855, 0
      %1864 = vmatpush.xpose.msra.mxu0 0.0
      %1865 = vmatpush.xpose.msra.mxu0 0.0
      %1866 = vmatpush.xpose.msra.mxu0 0.0
      %1867 = vmatpush.xpose.msra.mxu0 0.0
      %1868 = vmatpush.xpose.msra.mxu0 0.0
      %1869 = vmatpush.xpose.msra.mxu0 0.0
      %1870 = vmatpush.xpose.msra.mxu0 0.0
      %1871 = vmatpush.xpose.msra.mxu0 0.0
      %1872 = vmatpush.xpose.msra.mxu0 0.0
      %1873 = vmatpush.xpose.msra.mxu0 0.0
      %1874 = vmatpush.xpose.msra.mxu0 0.0
      %1875 = vmatpush.xpose.msra.mxu0 0.0
      %1876 = vmatpush.xpose.msra.mxu0 0.0
      %1877 = vmatpush.xpose.msra.mxu0 0.0
      %1878 = vmatpush.xpose.msra.mxu0 %v1862
      %1879 = vmatpush.xpose.msra.mxu0 %v1860
      %1880 = vmatmul.f32.gmra.mxu0 %v1856
      %v1881 = vpop.f32.mrf.mxu0
      %v1882 = vadd.f32 0.0, %v1881
      %1883 = vmatmul.f32.gmra.mxu0 %v1858
      %v1884 = vpop.f32.mrf.mxu0
      %v1885 = vadd.f32 0.0, %v1884
      %1886 = vdwg.mxu0
      %1889 = vrot.lane.b32.xlu0 %v1762, 104
      %v1890 = vpop.permute.xlu0 %1889
      %1891 = vrot.lane.b32.xlu0 %v1763, 104
      %v1892 = vpop.permute.xlu0 %1891
      %1893 = vrot.lane.b32.xlu0 %v1762, 72
      %v1894 = vpop.permute.xlu0 %1893
      %1895 = vrot.lane.b32.xlu0 %v1763, 72
      %v1896 = vpop.permute.xlu0 %1895
      %v1897 = vsel %vm314, %v1890, 0
      %v1899 = vsel %vm314, %v1892, 0
      %v1901 = vsel %vm314, %v1894, 0
      %v1903 = vsel %vm314, %v1896, 0
      %1905 = vmatpush.xpose.msra.mxu0 0.0
      %1906 = vmatpush.xpose.msra.mxu0 0.0
      %1907 = vmatpush.xpose.msra.mxu0 0.0
      %1908 = vmatpush.xpose.msra.mxu0 0.0
      %1909 = vmatpush.xpose.msra.mxu0 0.0
      %1910 = vmatpush.xpose.msra.mxu0 0.0
      %1911 = vmatpush.xpose.msra.mxu0 0.0
      %1912 = vmatpush.xpose.msra.mxu0 0.0
      %1913 = vmatpush.xpose.msra.mxu0 0.0
      %1914 = vmatpush.xpose.msra.mxu0 0.0
      %1915 = vmatpush.xpose.msra.mxu0 0.0
      %1916 = vmatpush.xpose.msra.mxu0 0.0
      %1917 = vmatpush.xpose.msra.mxu0 0.0
      %1918 = vmatpush.xpose.msra.mxu0 0.0
      %1919 = vmatpush.xpose.msra.mxu0 %v1903
      %1920 = vmatpush.xpose.msra.mxu0 %v1901
      %1921 = vmatmul.f32.gmra.mxu0 %v1897
      %v1922 = vpop.f32.mrf.mxu0
      %v1923 = vadd.f32 0.0, %v1922
      %1924 = vmatmul.f32.gmra.mxu0 %v1899
      %v1925 = vpop.f32.mrf.mxu0
      %v1926 = vadd.f32 0.0, %v1925
      %1927 = vdwg.mxu0
      %v1928 = vsel %vm457, %v1800, -inf
      %1929 = vmax.xlane.f32.xlu0 %v1928
      %v1930 = vpop.xlane.xlu0 %1929
      %v1931 = vsel %vm457, %v1803, -inf
      %1932 = vmax.xlane.f32.xlu0 %v1931
      %v1933 = vpop.xlane.xlu0 %1932
      %v1934 = vsel %vm457, %v1841, -inf
      %1935 = vmax.xlane.f32.xlu0 %v1934
      %v1936 = vpop.xlane.xlu0 %1935
      %v1937 = vsel %vm457, %v1844, -inf
      %1938 = vmax.xlane.f32.xlu0 %v1937
      %v1939 = vpop.xlane.xlu0 %1938
      %v1940 = vsel %vm457, %v1882, -inf
      %1941 = vmax.xlane.f32.xlu0 %v1940
      %v1942 = vpop.xlane.xlu0 %1941
      %v1943 = vsel %vm457, %v1885, -inf
      %1944 = vmax.xlane.f32.xlu0 %v1943
      %v1945 = vpop.xlane.xlu0 %1944
      %v1946 = vsel %vm457, %v1923, -inf
      %1947 = vmax.xlane.f32.xlu0 %v1946
      %v1948 = vpop.xlane.xlu0 %1947
      %v1949 = vsel %vm457, %v1926, -inf
      %1950 = vmax.xlane.f32.xlu0 %v1949
      %v1951 = vpop.xlane.xlu0 %1950
      %v1952 = vsub.f32 %v1800, %v1930
      %v1953 = vsub.f32 %v1803, %v1933
      %v1954 = vsub.f32 %v1841, %v1936
      %v1955 = vsub.f32 %v1844, %v1939
      %v1956 = vsub.f32 %v1882, %v1942
      %v1957 = vsub.f32 %v1885, %v1945
      %v1958 = vsub.f32 %v1923, %v1948
      %v1959 = vsub.f32 %v1926, %v1951
      %v1960 = vmul.f32 %v1952, 1.442695
      %v1961 = vpow.pop %v1960
      %v1962 = vmul.f32 %v1953, 1.442695
      %v1963 = vpow.pop %v1962
      %v1964 = vmul.f32 %v1954, 1.442695
      %v1965 = vpow.pop %v1964
      %v1966 = vmul.f32 %v1955, 1.442695
      %v1967 = vpow.pop %v1966
      %v1968 = vmul.f32 %v1956, 1.442695
      %v1969 = vpow.pop %v1968
      %v1970 = vmul.f32 %v1957, 1.442695
      %v1971 = vpow.pop %v1970
      %v1972 = vmul.f32 %v1958, 1.442695
      %v1973 = vpow.pop %v1972
      %v1974 = vmul.f32 %v1959, 1.442695
      %v1975 = vpow.pop %v1974
      %v1976 = vsel %vm457, %v1961, 0.0
      %1977 = vadd.xlane.f32.xlu0 %v1976
      %v1978 = vpop.xlane.xlu0 %1977
      %v1979 = vsel %vm457, %v1963, 0.0
      %1980 = vadd.xlane.f32.xlu0 %v1979
      %v1981 = vpop.xlane.xlu0 %1980
      %v1982 = vsel %vm457, %v1965, 0.0
      %1983 = vadd.xlane.f32.xlu0 %v1982
      %v1984 = vpop.xlane.xlu0 %1983
      %v1985 = vsel %vm457, %v1967, 0.0
      %1986 = vadd.xlane.f32.xlu0 %v1985
      %v1987 = vpop.xlane.xlu0 %1986
      %v1988 = vsel %vm457, %v1969, 0.0
      %1989 = vadd.xlane.f32.xlu0 %v1988
      %v1990 = vpop.xlane.xlu0 %1989
      %v1991 = vsel %vm457, %v1971, 0.0
      %1992 = vadd.xlane.f32.xlu0 %v1991
      %v1993 = vpop.xlane.xlu0 %1992
      %v1994 = vsel %vm457, %v1973, 0.0
      %1995 = vadd.xlane.f32.xlu0 %v1994
      %v1996 = vpop.xlane.xlu0 %1995
      %v1997 = vsel %vm457, %v1975, 0.0
      %1998 = vadd.xlane.f32.xlu0 %v1997
      %v1999 = vpop.xlane.xlu0 %1998
      %2000 = vrot.lane.b32.xlu0 %v1756, 40
      %v2001 = vpop.permute.xlu0 %2000
      %2002 = vrot.lane.b32.xlu0 %v1757, 40
      %v2003 = vpop.permute.xlu0 %2002
      %v2007 = vsel %vm457, %v1961, 0
      %v2010 = vsel %vm457, %v1963, 0
      %2012 = vmatpush.msra.mxu0 0.0
      %2013 = vmatpush.msra.mxu0 0.0
      %2014 = vmatpush.msra.mxu0 0.0
      %2015 = vmatpush.msra.mxu0 0.0
      %2016 = vmatpush.msra.mxu0 0.0
      %2017 = vmatpush.msra.mxu0 0.0
      %2018 = vmatpush.msra.mxu0 0.0
      %2019 = vmatpush.msra.mxu0 0.0
      %2020 = vmatpush.msra.mxu0 0.0
      %2021 = vmatpush.msra.mxu0 0.0
      %2022 = vmatpush.msra.mxu0 0.0
      %2023 = vmatpush.msra.mxu0 0.0
      %2024 = vmatpush.msra.mxu0 0.0
      %2025 = vmatpush.msra.mxu0 0.0
      %2026 = vmatpush.msra.mxu0 %v2003
      %2027 = vmatpush.msra.mxu0 %v2001
      %2028 = vmatmul.f32.gmra.mxu0 %v2007
      %v2029 = vpop.f32.mrf.mxu0
      %v2030 = vadd.f32 0.0, %v2029
      %2031 = vmatmul.f32.gmra.mxu0 %v2010
      %v2032 = vpop.f32.mrf.mxu0
      %v2033 = vadd.f32 0.0, %v2032
      %2034 = vdwg.mxu0
      %2035 = vrot.lane.b32.xlu0 %v1758, 40
      %v2036 = vpop.permute.xlu0 %2035
      %2037 = vrot.lane.b32.xlu0 %v1759, 40
      %v2038 = vpop.permute.xlu0 %2037
      %v2042 = vsel %vm457, %v1965, 0
      %v2045 = vsel %vm457, %v1967, 0
      %2047 = vmatpush.msra.mxu0 0.0
      %2048 = vmatpush.msra.mxu0 0.0
      %2049 = vmatpush.msra.mxu0 0.0
      %2050 = vmatpush.msra.mxu0 0.0
      %2051 = vmatpush.msra.mxu0 0.0
      %2052 = vmatpush.msra.mxu0 0.0
      %2053 = vmatpush.msra.mxu0 0.0
      %2054 = vmatpush.msra.mxu0 0.0
      %2055 = vmatpush.msra.mxu0 0.0
      %2056 = vmatpush.msra.mxu0 0.0
      %2057 = vmatpush.msra.mxu0 0.0
      %2058 = vmatpush.msra.mxu0 0.0
      %2059 = vmatpush.msra.mxu0 0.0
      %2060 = vmatpush.msra.mxu0 0.0
      %2061 = vmatpush.msra.mxu0 %v2038
      %2062 = vmatpush.msra.mxu0 %v2036
      %2063 = vmatmul.f32.gmra.mxu0 %v2042
      %v2064 = vpop.f32.mrf.mxu0
      %v2065 = vadd.f32 0.0, %v2064
      %2066 = vmatmul.f32.gmra.mxu0 %v2045
      %v2067 = vpop.f32.mrf.mxu0
      %v2068 = vadd.f32 0.0, %v2067
      %2069 = vdwg.mxu0
      %2070 = vrot.lane.b32.xlu0 %v1760, 40
      %v2071 = vpop.permute.xlu0 %2070
      %2072 = vrot.lane.b32.xlu0 %v1761, 40
      %v2073 = vpop.permute.xlu0 %2072
      %v2077 = vsel %vm457, %v1969, 0
      %v2080 = vsel %vm457, %v1971, 0
      %2082 = vmatpush.msra.mxu0 0.0
      %2083 = vmatpush.msra.mxu0 0.0
      %2084 = vmatpush.msra.mxu0 0.0
      %2085 = vmatpush.msra.mxu0 0.0
      %2086 = vmatpush.msra.mxu0 0.0
      %2087 = vmatpush.msra.mxu0 0.0
      %2088 = vmatpush.msra.mxu0 0.0
      %2089 = vmatpush.msra.mxu0 0.0
      %2090 = vmatpush.msra.mxu0 0.0
      %2091 = vmatpush.msra.mxu0 0.0
      %2092 = vmatpush.msra.mxu0 0.0
      %2093 = vmatpush.msra.mxu0 0.0
      %2094 = vmatpush.msra.mxu0 0.0
      %2095 = vmatpush.msra.mxu0 0.0
      %2096 = vmatpush.msra.mxu0 %v2073
      %2097 = vmatpush.msra.mxu0 %v2071
      %2098 = vmatmul.f32.gmra.mxu0 %v2077
      %v2099 = vpop.f32.mrf.mxu0
      %v2100 = vadd.f32 0.0, %v2099
      %2101 = vmatmul.f32.gmra.mxu0 %v2080
      %v2102 = vpop.f32.mrf.mxu0
      %v2103 = vadd.f32 0.0, %v2102
      %2104 = vdwg.mxu0
      %2105 = vrot.lane.b32.xlu0 %v1762, 40
      %v2106 = vpop.permute.xlu0 %2105
      %2107 = vrot.lane.b32.xlu0 %v1763, 40
      %v2108 = vpop.permute.xlu0 %2107
      %v2112 = vsel %vm457, %v1973, 0
      %v2115 = vsel %vm457, %v1975, 0
      %2117 = vmatpush.msra.mxu0 0.0
      %2118 = vmatpush.msra.mxu0 0.0
      %2119 = vmatpush.msra.mxu0 0.0
      %2120 = vmatpush.msra.mxu0 0.0
      %2121 = vmatpush.msra.mxu0 0.0
      %2122 = vmatpush.msra.mxu0 0.0
      %2123 = vmatpush.msra.mxu0 0.0
      %2124 = vmatpush.msra.mxu0 0.0
      %2125 = vmatpush.msra.mxu0 0.0
      %2126 = vmatpush.msra.mxu0 0.0
      %2127 = vmatpush.msra.mxu0 0.0
      %2128 = vmatpush.msra.mxu0 0.0
      %2129 = vmatpush.msra.mxu0 0.0
      %2130 = vmatpush.msra.mxu0 0.0
      %2131 = vmatpush.msra.mxu0 %v2108
      %2132 = vmatpush.msra.mxu0 %v2106
      %2133 = vmatmul.f32.gmra.mxu0 %v2112
      %v2134 = vpop.f32.mrf.mxu0
      %v2135 = vadd.f32 0.0, %v2134
      %2136 = vmatmul.f32.gmra.mxu0 %v2115
      %v2137 = vpop.f32.mrf.mxu0
      %v2138 = vadd.f32 0.0, %v2137
      %2139 = vdwg.mxu0
      %v2140 = vrcp.pop %v1978
      %v2141 = vrcp.pop %v1981
      %v2142 = vrcp.pop %v1984
      %v2143 = vrcp.pop %v1987
      %v2144 = vrcp.pop %v1990
      %v2145 = vrcp.pop %v1993
      %v2146 = vrcp.pop %v1996
      %v2147 = vrcp.pop %v1999
      %v2148 = vmul.f32 %v2030, %v2140
      %v2149 = vmul.f32 %v2033, %v2141
      %v2150 = vmul.f32 %v2065, %v2142
      %v2151 = vmul.f32 %v2068, %v2143
      %v2152 = vmul.f32 %v2100, %v2144
      %v2153 = vmul.f32 %v2103, %v2145
      %v2154 = vmul.f32 %v2135, %v2146
      %v2155 = vmul.f32 %v2138, %v2147
      %v2156 = vld [vmem:[#allocation3] sm:$0xff]
      %v2157 = vld [vmem:[#allocation3 + $0x8] sm:$0xff]
      %v2158 = vld [vmem:[#allocation3 + $0x10] sm:$0xff]
      %v2159 = vld [vmem:[#allocation3 + $0x18] sm:$0xff]
      %v2160 = vld [vmem:[#allocation3 + $0x20] sm:$0xff]
      %v2161 = vld [vmem:[#allocation3 + $0x28] sm:$0xff]
      %v2162 = vld [vmem:[#allocation3 + $0x30] sm:$0xff]
      %v2163 = vld [vmem:[#allocation3 + $0x38] sm:$0xff]
      %v2164 = vld [vmem:[%s2 + $0x18] sm:$0xff]
      %v2166 = vsel %vm314, %v2148, 0
      %v2169 = vsel %vm314, %v2149, 0
      %v2172 = vsel %vm314, %v2150, 0
      %v2175 = vsel %vm314, %v2151, 0
      %v2178 = vsel %vm314, %v2152, 0
      %v2181 = vsel %vm314, %v2153, 0
      %v2184 = vsel %vm314, %v2154, 0
      %v2187 = vsel %vm314, %v2155, 0
      %2189 = vmatpush.msra.mxu0 0.0
      %2190 = vmatpush.msra.mxu0 0.0
      %2191 = vmatpush.msra.mxu0 0.0
      %2192 = vmatpush.msra.mxu0 0.0
      %2193 = vmatpush.msra.mxu0 0.0
      %2194 = vmatpush.msra.mxu0 0.0
      %2195 = vmatpush.msra.mxu0 0.0
      %2196 = vmatpush.msra.mxu0 0.0
      %2197 = vmatpush.msra.mxu0 0.0
      %2198 = vmatpush.msra.mxu0 0.0
      %2199 = vmatpush.msra.mxu0 0.0
      %2200 = vmatpush.msra.mxu0 0.0
      %2201 = vmatpush.msra.mxu0 0.0
      %2202 = vmatpush.msra.mxu0 0.0
      %2203 = vmatpush.msra.mxu0 0.0
      %2204 = vmatpush.msra.mxu0 %v2164
      %2205 = vmatmul.f32.gmra.mxu0 %v2166
      %v2206 = vpop.f32.mrf.mxu0
      %v2207 = vadd.f32 0.0, %v2206
      %2208 = vmatmul.f32.gmra.mxu0 %v2169
      %v2209 = vpop.f32.mrf.mxu0
      %v2210 = vadd.f32 0.0, %v2209
      %2211 = vmatmul.f32.gmra.mxu0 %v2172
      %v2212 = vpop.f32.mrf.mxu0
      %v2213 = vadd.f32 0.0, %v2212
      %2214 = vmatmul.f32.gmra.mxu0 %v2175
      %v2215 = vpop.f32.mrf.mxu0
      %v2216 = vadd.f32 0.0, %v2215
      %2217 = vmatmul.f32.gmra.mxu0 %v2178
      %v2218 = vpop.f32.mrf.mxu0
      %v2219 = vadd.f32 0.0, %v2218
      %2220 = vmatmul.f32.gmra.mxu0 %v2181
      %v2221 = vpop.f32.mrf.mxu0
      %v2222 = vadd.f32 0.0, %v2221
      %2223 = vmatmul.f32.gmra.mxu0 %v2184
      %v2224 = vpop.f32.mrf.mxu0
      %v2225 = vadd.f32 0.0, %v2224
      %2226 = vmatmul.f32.gmra.mxu0 %v2187
      %v2227 = vpop.f32.mrf.mxu0
      %v2228 = vadd.f32 0.0, %v2227
      %2229 = vdwg.mxu0
      %v2230 = vadd.f32 %v2156, %v2207
      %v2231 = vadd.f32 %v2157, %v2210
      %v2232 = vadd.f32 %v2158, %v2213
      %v2233 = vadd.f32 %v2159, %v2216
      %v2234 = vadd.f32 %v2160, %v2219
      %v2235 = vadd.f32 %v2161, %v2222
      %v2236 = vadd.f32 %v2162, %v2225
      %v2237 = vadd.f32 %v2163, %v2228
      %2238 = vst.msk [vmem:[#allocation3] sm:$0xff] %vm213, %v2230
      %2239 = vst.msk [vmem:[#allocation3 + $0x8] sm:$0xff] %vm213, %v2231
      %2240 = vst.msk [vmem:[#allocation3 + $0x10] sm:$0xff] %vm213, %v2232
      %2241 = vst.msk [vmem:[#allocation3 + $0x18] sm:$0xff] %vm213, %v2233
      %2242 = vst.msk [vmem:[#allocation3 + $0x20] sm:$0xff] %vm213, %v2234
      %2243 = vst.msk [vmem:[#allocation3 + $0x28] sm:$0xff] %vm213, %v2235
      %2244 = vst.msk [vmem:[#allocation3 + $0x30] sm:$0xff] %vm213, %v2236
      %2245 = vst.msk [vmem:[#allocation3 + $0x38] sm:$0xff] %vm213, %v2237
      %v2246 = vld [vmem:[#allocation3] sm:$0xff]
      %v2247 = vld [vmem:[#allocation3 + $0x8] sm:$0xff]
      %v2248 = vld [vmem:[#allocation3 + $0x10] sm:$0xff]
      %v2249 = vld [vmem:[#allocation3 + $0x18] sm:$0xff]
      %v2250 = vld [vmem:[#allocation3 + $0x20] sm:$0xff]
      %v2251 = vld [vmem:[#allocation3 + $0x28] sm:$0xff]
      %v2252 = vld [vmem:[#allocation3 + $0x30] sm:$0xff]
      %v2253 = vld [vmem:[#allocation3 + $0x38] sm:$0xff]
      %2254 = vst.msk [vmem:[%s199] sm:$0xff] %vm213, %v2246
      %2255 = vst.msk [vmem:[%s199 + $0x8] sm:$0xff] %vm213, %v2247
      %2256 = vst.msk [vmem:[%s199 + $0x10] sm:$0xff] %vm213, %v2248
      %2257 = vst.msk [vmem:[%s199 + $0x18] sm:$0xff] %vm213, %v2249
      %2258 = vst.msk [vmem:[%s199 + $0x20] sm:$0xff] %vm213, %v2250
      %2259 = vst.msk [vmem:[%s199 + $0x28] sm:$0xff] %vm213, %v2251
      %2260 = vst.msk [vmem:[%s199 + $0x30] sm:$0xff] %vm213, %v2252
      %2261 = vst.msk [vmem:[%s199 + $0x38] sm:$0xff] %vm213, %v2253
      %s2262 = smul.u32 8, %s15
      %p2263 = scmp.lt.s32.totalorder %s2262, 15
      %s2264 = scalar_select %p2263, %s2262, 15
      %s2265 = smul.addr %s2264, 8
      %s2266 = scalar_lea.vmem %s4, %s2265
      // Predicated region
      $region37: #{tpu_custom_call.1} parent=35 // pred_check
        %p2267 = pneg %p122
      $region38: #{tpu_custom_call.1} parent=35 // pred_check_branch
        %2269 = sbr.rel (%p2267) target = $region40
      $region39: #{tpu_custom_call.1} parent=35 // pred_region
        %s2270 = smul.u32 8, %s15
      $region40: #{tpu_custom_call.1} parent=35 // pred_fallthru
        _
    $region36: #{tpu_custom_call.1} parent=5 // pred_fallthru
      _
    %p2271 = scmp.le.s32.totalorder 2, %s10
    // Predicated region
    $region41: #{tpu_custom_call.1} parent=5 // pred_check
      %p2272 = pneg %p2271
    $region42: #{tpu_custom_call.1} parent=5 // pred_check_branch
      %2274 = sbr.rel (%p2272) target = $region44
    $region43: #{tpu_custom_call.1} parent=5 // pred_region
      %s2275 = ssub.s32 %s10, 2
      // Predicated region
      $region45: #{tpu_custom_call.1} parent=43 // pred_check
        %p2276 = pneg %p128
      $region46: #{tpu_custom_call.1} parent=43 // pred_check_branch
        %2278 = sbr.rel (%p2276) target = $region48
      $region47: #{tpu_custom_call.1} parent=43 // pred_region
        %s2279 = smul.u32 8, %s16
        %p2280 = scmp.lt.s32.totalorder %s2279, 15
        %s2281 = scalar_select %p2280, %s2279, 15
        %s2282 = smul.addr %s2281, 8
        %s2283 = scalar_lea.vmem %s4, %s2282
      $region48: #{tpu_custom_call.1} parent=43 // pred_fallthru
        _
    $region44: #{tpu_custom_call.1} parent=5 // pred_fallthru
      _
  $region6: #{tpu_custom_call.1} parent=0 // loop_footer
    %s14 = sadd.s32 1, %s10
  $region7: #{tpu_custom_call.1} parent=0 // loop_footer_branch
    %9 = sbr.rel target = $region3
  $region8: #{tpu_custom_call.1} parent=0 // loop_exit
    _

</llo_original>
